<compile_context>
chip_gen: v6e
topology: v6e:2x2x1
jax: 0.10.0
libtpu: 0.0.40
codegen_flags: <defaults>
</compile_context>

<pallas_src>
import jax
import jax.numpy as jnp
from jax.experimental import pallas as pl
from jax.experimental.pallas import tpu as pltpu  # noqa: F401  (TPU backend)


_LANE = 128      # TPU lane width; logits padded to this for unmasked stores.
_HIDDEN = 256    # hidden width hardcoded by the PyTorch module.


def _round_up(n, m):
    return ((n + m - 1) // m) * m


def _frozen_heads_kernel(x0_ref, x1_ref, x2_ref, x3_ref,
                         w10_ref, w11_ref, w12_ref, w13_ref,
                         b1_ref, w2_ref, b2_ref, out_ref):
    """Single step, no grid.  Per head i (unrolled):

        h_i = relu(x_i @ w1_i + b1_i)          # bf16 inputs, f32 accum
        out[i] = h_i @ w2_i + b2_i             # bf16 inputs, f32 accum

    Shapes seen by the kernel (whole arrays in VMEM):
      x_i:(B, D_i) f32   w1_i:(D_i, H) bf16   b1:(4,1,H) f32
      w2:(4, H, Cp) bf16  b2:(4,1,Cp) f32     out:(4, B, Cp) f32
    """
    xs = (x0_ref, x1_ref, x2_ref, x3_ref)
    w1s = (w10_ref, w11_ref, w12_ref, w13_ref)
    for i in range(4):
        h = jnp.dot(xs[i][...].astype(jnp.bfloat16), w1s[i][...],
                    preferred_element_type=jnp.float32)
        h = jnp.maximum(h + b1_ref[i], 0.0)
        o = jnp.dot(h.astype(jnp.bfloat16), w2_ref[i],
                    preferred_element_type=jnp.float32)
        out_ref[i] = (o + b2_ref[i]).astype(out_ref.dtype)


def fused_heads(x_list, packed):
    """x_list: 4 arrays (B, D_i); returns (4, B, C_pad) f32 padded logits."""
    B = x_list[0].shape[0]
    c_pad = packed["w2"].shape[-1]
    return pl.pallas_call(
        _frozen_heads_kernel,
        out_shape=jax.ShapeDtypeStruct((4, B, c_pad), jnp.float32),
        # No grid / BlockSpecs: whole arrays land in VMEM (single DMA each),
        # which is the right regime for this tiny, DMA-bound workload.
    )(*x_list, *packed["w1"], packed["b1"], packed["w2"], packed["b2"])


def init_frozen_params(key, channels, num_classes=10, hidden=_HIDDEN,
                       dtype=jnp.float32):
    """Deterministic fp32 master params for the 4 (Linear, Linear) heads.

    Weights are stored as (in, out), i.e. already transposed relative to
    PyTorch's nn.Linear weight, so forward is `x @ W + b`.
    """
    params = []
    for c in channels:
        in_dim = c * 2 * 2
        key, k1, k2, k3, k4 = jax.random.split(key, 5)
        bound1 = 1.0 / jnp.sqrt(in_dim)
        bound2 = 1.0 / jnp.sqrt(hidden)
        w1 = jax.random.uniform(k1, (in_dim, hidden), dtype, -bound1, bound1)
        b1 = jax.random.uniform(k2, (hidden,), dtype, -bound1, bound1)
        w2 = jax.random.uniform(k3, (hidden, num_classes), dtype, -bound2, bound2)
        b2 = jax.random.uniform(k4, (num_classes,), dtype, -bound2, bound2)
        params.append((w1, b1, w2, b2))
    return params


def pack_frozen_params(params, num_classes, weight_dtype=jnp.bfloat16):
    """One-time packing for the kernel.

    * w1_i keeps its natural (D_i, H) shape (no global-max K padding), cast
      to bf16 to halve the dominant weight-HBM traffic.
    * w2 / b2 columns are zero-padded to a multiple of 128 (lane-dense,
      unmasked output stores); b1/b2 stay fp32 (exact add, negligible bytes).
    """
    hidden = params[0][1].shape[0]
    c_pad = _round_up(num_classes, _LANE)

    w1s = tuple(w1.astype(weight_dtype) for (w1, _, _, _) in params)
    b1 = jnp.stack([b1.reshape(1, hidden) for (_, b1, _, _) in params]
                   ).astype(jnp.float32)                       # (4, 1, H)
    w2 = jnp.stack([jnp.pad(w2, ((0, 0), (0, c_pad - num_classes)))
                    for (_, _, w2, _) in params]).astype(weight_dtype)  # (4, H, Cp)
    b2 = jnp.stack([jnp.pad(b2, (0, c_pad - num_classes)).reshape(1, c_pad)
                    for (_, _, _, b2) in params]).astype(jnp.float32)   # (4, 1, Cp)

    return {"w1": w1s, "b1": b1, "w2": w2, "b2": b2,
            "num_classes": num_classes}


def frozen_forward(frozen_outputs, packed):
    """Mirror of Frozen.forward, taking the backbone outputs as inputs.

    frozen_outputs = (f256_15, f256_16, f256_17, f256_18, f640, output_original)
    where the first four are contiguous NCHW (B, C_i, 2, 2), f640 ('avgpool')
    is unused, and output_original is the backbone's (B, num_classes) logits.
    """
    f15, f16, f17, f18, _f640_unused, output_original = frozen_outputs
    B = f15.shape[0]

    # Free contiguous NCHW trailing-dim collapse, identical to torch .view;
    # done in the wrapper so the kernel sees a lane-dense (B, 4C) layout.
    xs = [f.reshape(B, -1) for f in (f15, f16, f17, f18)]

    out_pad = fused_heads(xs, packed)                      # (4, B, C_pad)
    out = out_pad[:, :, :packed["num_classes"]]            # drop zero pad

    return [out[0], out[1], out[2], out[3], output_original]


if __name__ == "__main__":
    key = jax.random.PRNGKey(0)

    B = 8
    channels = [32, 48, 64, 64]   # small, heterogeneous widths -> D_i = 128,192,256,256
    num_classes = 10

    master_params = init_frozen_params(key, channels, num_classes)
    packed = pack_frozen_params(master_params, num_classes)

    # Synthetic outputs of the frozen backbone (NCHW feature maps + logits).
    key, *fk = jax.random.split(key, 8)
    f15 = jax.random.normal(fk[0], (B, channels[0], 2, 2), jnp.float32)
    f16 = jax.random.normal(fk[1], (B, channels[1], 2, 2), jnp.float32)
    f17 = jax.random.normal(fk[2], (B, channels[2], 2, 2), jnp.float32)
    f18 = jax.random.normal(fk[3], (B, channels[3], 2, 2), jnp.float32)
    f640 = jax.random.normal(fk[4], (B, 640, 1, 1), jnp.float32)  # 'avgpool' (unused)
    output_original = jax.random.normal(fk[5], (B, num_classes), jnp.float32)

    outs = frozen_forward((f15, f16, f17, f18, f640, output_original), packed)
    outs = [jax.block_until_ready(o) for o in outs]

    # Reference mirroring the kernel's precision (bf16 weights/activations,
    # fp32 accumulation) so the comparison tolerance can stay tight.
    for f, (w1, b1, w2, b2), o in zip((f15, f16, f17, f18),
                                      master_params, outs[:4]):
        x = f.reshape(B, -1)
        h = jnp.dot(x.astype(jnp.bfloat16), w1.astype(jnp.bfloat16),
                    preferred_element_type=jnp.float32) + b1
        h = jnp.maximum(h, 0.0)
        ref = jnp.dot(h.astype(jnp.bfloat16), w2.astype(jnp.bfloat16),
                      preferred_element_type=jnp.float32) + b2
        assert o.shape == (B, num_classes)
        assert jnp.allclose(o, ref, atol=1e-2, rtol=1e-2), \
            float(jnp.max(jnp.abs(o - ref)))
    assert outs[4].shape == (B, num_classes)

    print("KERNEL_OK")
</pallas_src>

<mosaic_0001>
module attributes {stable_mosaic.version = 11 : i64} {
  func.func @_frozen_heads_kernel(%arg0: memref<8x128xf32, #tpu.memory_space<vmem>>, %arg1: memref<8x192xf32, #tpu.memory_space<vmem>>, %arg2: memref<8x256xf32, #tpu.memory_space<vmem>>, %arg3: memref<8x256xf32, #tpu.memory_space<vmem>>, %arg4: memref<128x256xbf16, #tpu.memory_space<vmem>>, %arg5: memref<192x256xbf16, #tpu.memory_space<vmem>>, %arg6: memref<256x256xbf16, #tpu.memory_space<vmem>>, %arg7: memref<256x256xbf16, #tpu.memory_space<vmem>>, %arg8: memref<4x1x256xf32, #tpu.memory_space<vmem>>, %arg9: memref<4x256x128xbf16, #tpu.memory_space<vmem>>, %arg10: memref<4x1x128xf32, #tpu.memory_space<vmem>>, %arg11: memref<4x8x128xf32, #tpu.memory_space<vmem>>) attributes {dimension_semantics = [], scalar_prefetch = 0 : i64, scratch_operands = 0 : i64, tpu.core_type = #tpu.core_type<tc>} {
    %c0 = arith.constant 0 : index
    %c0_0 = arith.constant 0 : index
    %0 = vector.load %arg0[%c0, %c0_0] : memref<8x128xf32, #tpu.memory_space<vmem>>, vector<8x128xf32>
    %1 = arith.truncf %0 : vector<8x128xf32> to vector<8x128xbf16>
    %c0_1 = arith.constant 0 : index
    %c0_2 = arith.constant 0 : index
    %2 = vector.load %arg4[%c0_1, %c0_2] : memref<128x256xbf16, #tpu.memory_space<vmem>>, vector<128x256xbf16>
    %cst = arith.constant dense<0.000000e+00> : vector<8x256xf32>
    %3 = tpu.matmul %1, %2, %cst {dimension_numbers = #tpu.dot_dimension_numbers<[1], [0], [0], [1], [0, 0, 1, 1], [], []>} : vector<8x128xbf16>, vector<128x256xbf16>, vector<8x256xf32> -> vector<8x256xf32>
    %c0_3 = arith.constant 0 : index
    %c0_4 = arith.constant 0 : index
    %c0_5 = arith.constant 0 : index
    %4 = vector.load %arg8[%c0_3, %c0_4, %c0_5] : memref<4x1x256xf32, #tpu.memory_space<vmem>>, vector<1x1x256xf32>
    %5 = vector.shape_cast %4 : vector<1x1x256xf32> to vector<1x256xf32>
    %6 = vector.broadcast %5 : vector<1x256xf32> to vector<8x256xf32>
    %7 = arith.addf %3, %6 : vector<8x256xf32>
    %cst_6 = arith.constant 0.000000e+00 : f32
    %8 = vector.broadcast %cst_6 : f32 to vector<8x256xf32>
    %9 = arith.maximumf %7, %8 : vector<8x256xf32>
    %10 = arith.truncf %9 : vector<8x256xf32> to vector<8x256xbf16>
    %c0_7 = arith.constant 0 : index
    %c0_8 = arith.constant 0 : index
    %c0_9 = arith.constant 0 : index
    %11 = vector.load %arg9[%c0_7, %c0_8, %c0_9] : memref<4x256x128xbf16, #tpu.memory_space<vmem>>, vector<1x256x128xbf16>
    %12 = vector.shape_cast %11 : vector<1x256x128xbf16> to vector<256x128xbf16>
    %cst_10 = arith.constant dense<0.000000e+00> : vector<8x128xf32>
    %13 = tpu.matmul %10, %12, %cst_10 {dimension_numbers = #tpu.dot_dimension_numbers<[1], [0], [0], [1], [0, 0, 1, 1], [], []>} : vector<8x256xbf16>, vector<256x128xbf16>, vector<8x128xf32> -> vector<8x128xf32>
    %c0_11 = arith.constant 0 : index
    %c0_12 = arith.constant 0 : index
    %c0_13 = arith.constant 0 : index
    %14 = vector.load %arg10[%c0_11, %c0_12, %c0_13] : memref<4x1x128xf32, #tpu.memory_space<vmem>>, vector<1x1x128xf32>
    %15 = vector.shape_cast %14 : vector<1x1x128xf32> to vector<1x128xf32>
    %16 = vector.broadcast %15 : vector<1x128xf32> to vector<8x128xf32>
    %17 = arith.addf %13, %16 : vector<8x128xf32>
    %c0_14 = arith.constant 0 : index
    %c0_15 = arith.constant 0 : index
    %c0_16 = arith.constant 0 : index
    %18 = vector.load %arg11[%c0_14, %c0_15, %c0_16] : memref<4x8x128xf32, #tpu.memory_space<vmem>>, vector<1x8x128xf32>
    %19 = vector.shape_cast %18 : vector<1x8x128xf32> to vector<8x128xf32>
    %20 = vector.shape_cast %17 : vector<8x128xf32> to vector<1x8x128xf32>
    tpu.vector_store %arg11[%c0_14, %c0_15, %c0_16], %20 {strides = array<i32>} : memref<4x8x128xf32, #tpu.memory_space<vmem>>, vector<1x8x128xf32>,
    %c0_17 = arith.constant 0 : index
    %c0_18 = arith.constant 0 : index
    %21 = vector.load %arg1[%c0_17, %c0_18] : memref<8x192xf32, #tpu.memory_space<vmem>>, vector<8x192xf32>
    %22 = arith.truncf %21 : vector<8x192xf32> to vector<8x192xbf16>
    %c0_19 = arith.constant 0 : index
    %c0_20 = arith.constant 0 : index
    %23 = vector.load %arg5[%c0_19, %c0_20] : memref<192x256xbf16, #tpu.memory_space<vmem>>, vector<192x256xbf16>
    %cst_21 = arith.constant dense<0.000000e+00> : vector<8x256xf32>
    %24 = tpu.matmul %22, %23, %cst_21 {dimension_numbers = #tpu.dot_dimension_numbers<[1], [0], [0], [1], [0, 0, 1, 1], [], []>} : vector<8x192xbf16>, vector<192x256xbf16>, vector<8x256xf32> -> vector<8x256xf32>
    %c1 = arith.constant 1 : index
    %c0_22 = arith.constant 0 : index
    %c0_23 = arith.constant 0 : index
    %25 = vector.load %arg8[%c1, %c0_22, %c0_23] : memref<4x1x256xf32, #tpu.memory_space<vmem>>, vector<1x1x256xf32>
    %26 = vector.shape_cast %25 : vector<1x1x256xf32> to vector<1x256xf32>
    %27 = vector.broadcast %26 : vector<1x256xf32> to vector<8x256xf32>
    %28 = arith.addf %24, %27 : vector<8x256xf32>
    %cst_24 = arith.constant 0.000000e+00 : f32
    %29 = vector.broadcast %cst_24 : f32 to vector<8x256xf32>
    %30 = arith.maximumf %28, %29 : vector<8x256xf32>
    %31 = arith.truncf %30 : vector<8x256xf32> to vector<8x256xbf16>
    %c1_25 = arith.constant 1 : index
    %c0_26 = arith.constant 0 : index
    %c0_27 = arith.constant 0 : index
    %32 = vector.load %arg9[%c1_25, %c0_26, %c0_27] : memref<4x256x128xbf16, #tpu.memory_space<vmem>>, vector<1x256x128xbf16>
    %33 = vector.shape_cast %32 : vector<1x256x128xbf16> to vector<256x128xbf16>
    %cst_28 = arith.constant dense<0.000000e+00> : vector<8x128xf32>
    %34 = tpu.matmul %31, %33, %cst_28 {dimension_numbers = #tpu.dot_dimension_numbers<[1], [0], [0], [1], [0, 0, 1, 1], [], []>} : vector<8x256xbf16>, vector<256x128xbf16>, vector<8x128xf32> -> vector<8x128xf32>
    %c1_29 = arith.constant 1 : index
    %c0_30 = arith.constant 0 : index
    %c0_31 = arith.constant 0 : index
    %35 = vector.load %arg10[%c1_29, %c0_30, %c0_31] : memref<4x1x128xf32, #tpu.memory_space<vmem>>, vector<1x1x128xf32>
    %36 = vector.shape_cast %35 : vector<1x1x128xf32> to vector<1x128xf32>
    %37 = vector.broadcast %36 : vector<1x128xf32> to vector<8x128xf32>
    %38 = arith.addf %34, %37 : vector<8x128xf32>
    %c1_32 = arith.constant 1 : index
    %c0_33 = arith.constant 0 : index
    %c0_34 = arith.constant 0 : index
    %39 = vector.load %arg11[%c1_32, %c0_33, %c0_34] : memref<4x8x128xf32, #tpu.memory_space<vmem>>, vector<1x8x128xf32>
    %40 = vector.shape_cast %39 : vector<1x8x128xf32> to vector<8x128xf32>
    %41 = vector.shape_cast %38 : vector<8x128xf32> to vector<1x8x128xf32>
    tpu.vector_store %arg11[%c1_32, %c0_33, %c0_34], %41 {strides = array<i32>} : memref<4x8x128xf32, #tpu.memory_space<vmem>>, vector<1x8x128xf32>,
    %c0_35 = arith.constant 0 : index
    %c0_36 = arith.constant 0 : index
    %42 = vector.load %arg2[%c0_35, %c0_36] : memref<8x256xf32, #tpu.memory_space<vmem>>, vector<8x256xf32>
    %43 = arith.truncf %42 : vector<8x256xf32> to vector<8x256xbf16>
    %c0_37 = arith.constant 0 : index
    %c0_38 = arith.constant 0 : index
    %44 = vector.load %arg6[%c0_37, %c0_38] : memref<256x256xbf16, #tpu.memory_space<vmem>>, vector<256x256xbf16>
    %cst_39 = arith.constant dense<0.000000e+00> : vector<8x256xf32>
    %45 = tpu.matmul %43, %44, %cst_39 {dimension_numbers = #tpu.dot_dimension_numbers<[1], [0], [0], [1], [0, 0, 1, 1], [], []>} : vector<8x256xbf16>, vector<256x256xbf16>, vector<8x256xf32> -> vector<8x256xf32>
    %c2 = arith.constant 2 : index
    %c0_40 = arith.constant 0 : index
    %c0_41 = arith.constant 0 : index
    %46 = vector.load %arg8[%c2, %c0_40, %c0_41] : memref<4x1x256xf32, #tpu.memory_space<vmem>>, vector<1x1x256xf32>
    %47 = vector.shape_cast %46 : vector<1x1x256xf32> to vector<1x256xf32>
    %48 = vector.broadcast %47 : vector<1x256xf32> to vector<8x256xf32>
    %49 = arith.addf %45, %48 : vector<8x256xf32>
    %cst_42 = arith.constant 0.000000e+00 : f32
    %50 = vector.broadcast %cst_42 : f32 to vector<8x256xf32>
    %51 = arith.maximumf %49, %50 : vector<8x256xf32>
    %52 = arith.truncf %51 : vector<8x256xf32> to vector<8x256xbf16>
    %c2_43 = arith.constant 2 : index
    %c0_44 = arith.constant 0 : index
    %c0_45 = arith.constant 0 : index
    %53 = vector.load %arg9[%c2_43, %c0_44, %c0_45] : memref<4x256x128xbf16, #tpu.memory_space<vmem>>, vector<1x256x128xbf16>
    %54 = vector.shape_cast %53 : vector<1x256x128xbf16> to vector<256x128xbf16>
    %cst_46 = arith.constant dense<0.000000e+00> : vector<8x128xf32>
    %55 = tpu.matmul %52, %54, %cst_46 {dimension_numbers = #tpu.dot_dimension_numbers<[1], [0], [0], [1], [0, 0, 1, 1], [], []>} : vector<8x256xbf16>, vector<256x128xbf16>, vector<8x128xf32> -> vector<8x128xf32>
    %c2_47 = arith.constant 2 : index
    %c0_48 = arith.constant 0 : index
    %c0_49 = arith.constant 0 : index
    %56 = vector.load %arg10[%c2_47, %c0_48, %c0_49] : memref<4x1x128xf32, #tpu.memory_space<vmem>>, vector<1x1x128xf32>
    %57 = vector.shape_cast %56 : vector<1x1x128xf32> to vector<1x128xf32>
    %58 = vector.broadcast %57 : vector<1x128xf32> to vector<8x128xf32>
    %59 = arith.addf %55, %58 : vector<8x128xf32>
    %c2_50 = arith.constant 2 : index
    %c0_51 = arith.constant 0 : index
    %c0_52 = arith.constant 0 : index
    %60 = vector.load %arg11[%c2_50, %c0_51, %c0_52] : memref<4x8x128xf32, #tpu.memory_space<vmem>>, vector<1x8x128xf32>
    %61 = vector.shape_cast %60 : vector<1x8x128xf32> to vector<8x128xf32>
    %62 = vector.shape_cast %59 : vector<8x128xf32> to vector<1x8x128xf32>
    tpu.vector_store %arg11[%c2_50, %c0_51, %c0_52], %62 {strides = array<i32>} : memref<4x8x128xf32, #tpu.memory_space<vmem>>, vector<1x8x128xf32>,
    %c0_53 = arith.constant 0 : index
    %c0_54 = arith.constant 0 : index
    %63 = vector.load %arg3[%c0_53, %c0_54] : memref<8x256xf32, #tpu.memory_space<vmem>>, vector<8x256xf32>
    %64 = arith.truncf %63 : vector<8x256xf32> to vector<8x256xbf16>
    %c0_55 = arith.constant 0 : index
    %c0_56 = arith.constant 0 : index
    %65 = vector.load %arg7[%c0_55, %c0_56] : memref<256x256xbf16, #tpu.memory_space<vmem>>, vector<256x256xbf16>
    %cst_57 = arith.constant dense<0.000000e+00> : vector<8x256xf32>
    %66 = tpu.matmul %64, %65, %cst_57 {dimension_numbers = #tpu.dot_dimension_numbers<[1], [0], [0], [1], [0, 0, 1, 1], [], []>} : vector<8x256xbf16>, vector<256x256xbf16>, vector<8x256xf32> -> vector<8x256xf32>
    %c3 = arith.constant 3 : index
    %c0_58 = arith.constant 0 : index
    %c0_59 = arith.constant 0 : index
    %67 = vector.load %arg8[%c3, %c0_58, %c0_59] : memref<4x1x256xf32, #tpu.memory_space<vmem>>, vector<1x1x256xf32>
    %68 = vector.shape_cast %67 : vector<1x1x256xf32> to vector<1x256xf32>
    %69 = vector.broadcast %68 : vector<1x256xf32> to vector<8x256xf32>
    %70 = arith.addf %66, %69 : vector<8x256xf32>
    %cst_60 = arith.constant 0.000000e+00 : f32
    %71 = vector.broadcast %cst_60 : f32 to vector<8x256xf32>
    %72 = arith.maximumf %70, %71 : vector<8x256xf32>
    %73 = arith.truncf %72 : vector<8x256xf32> to vector<8x256xbf16>
    %c3_61 = arith.constant 3 : index
    %c0_62 = arith.constant 0 : index
    %c0_63 = arith.constant 0 : index
    %74 = vector.load %arg9[%c3_61, %c0_62, %c0_63] : memref<4x256x128xbf16, #tpu.memory_space<vmem>>, vector<1x256x128xbf16>
    %75 = vector.shape_cast %74 : vector<1x256x128xbf16> to vector<256x128xbf16>
    %cst_64 = arith.constant dense<0.000000e+00> : vector<8x128xf32>
    %76 = tpu.matmul %73, %75, %cst_64 {dimension_numbers = #tpu.dot_dimension_numbers<[1], [0], [0], [1], [0, 0, 1, 1], [], []>} : vector<8x256xbf16>, vector<256x128xbf16>, vector<8x128xf32> -> vector<8x128xf32>
    %c3_65 = arith.constant 3 : index
    %c0_66 = arith.constant 0 : index
    %c0_67 = arith.constant 0 : index
    %77 = vector.load %arg10[%c3_65, %c0_66, %c0_67] : memref<4x1x128xf32, #tpu.memory_space<vmem>>, vector<1x1x128xf32>
    %78 = vector.shape_cast %77 : vector<1x1x128xf32> to vector<1x128xf32>
    %79 = vector.broadcast %78 : vector<1x128xf32> to vector<8x128xf32>
    %80 = arith.addf %76, %79 : vector<8x128xf32>
    %c3_68 = arith.constant 3 : index
    %c0_69 = arith.constant 0 : index
    %c0_70 = arith.constant 0 : index
    %81 = vector.load %arg11[%c3_68, %c0_69, %c0_70] : memref<4x8x128xf32, #tpu.memory_space<vmem>>, vector<1x8x128xf32>
    %82 = vector.shape_cast %81 : vector<1x8x128xf32> to vector<8x128xf32>
    %83 = vector.shape_cast %80 : vector<8x128xf32> to vector<1x8x128xf32>
    tpu.vector_store %arg11[%c3_68, %c0_69, %c0_70], %83 {strides = array<i32>} : memref<4x8x128xf32, #tpu.memory_space<vmem>>, vector<1x8x128xf32>,
    return
  }
}

</mosaic_0001>

<llo_original>
// kernel: tpu_custom_call.1
$region0: #{tpu_custom_call.1}
  #allocation0 [shape = 'u32[]', space=smem, size = 0x4, offset = 0x4, fixed_abs, tag = 'smem constant byte address 0x4 - core index']
  #allocation1 [shape = 'u32[144,128]{1,0:T(1,128)}', space=vmem, size = 0x12000, scoped, tag = 'internal scratch']
  %s0 = inlined_call_operand.hbm [shape: f32[8,128], index: 0, kind: input, shape index: {}]
  %s1 = inlined_call_operand.hbm [shape: f32[8,192], index: 1, kind: input, shape index: {}]
  %s2 = inlined_call_operand.hbm [shape: f32[8,256], index: 2, kind: input, shape index: {}]
  %s3 = inlined_call_operand.hbm [shape: f32[8,256], index: 3, kind: input, shape index: {}]
  %s4 = inlined_call_operand.hbm [shape: bf16[128,256], index: 4, kind: input, shape index: {}]
  %s5 = inlined_call_operand.hbm [shape: bf16[192,256], index: 5, kind: input, shape index: {}]
  %s6 = inlined_call_operand.hbm [shape: bf16[256,256], index: 6, kind: input, shape index: {}]
  %s7 = inlined_call_operand.hbm [shape: bf16[256,256], index: 7, kind: input, shape index: {}]
  %s8 = inlined_call_operand.vmem [shape: f32[4,1,256], index: 8, kind: input, shape index: {}]
  %s9 = inlined_call_operand.hbm [shape: bf16[4,256,128], index: 9, kind: input, shape index: {}]
  %s10 = inlined_call_operand.vmem [shape: f32[4,1,128], index: 10, kind: input, shape index: {}]
  %s11 = inlined_call_operand.hbm [shape: f32[4,8,128], index: 11, kind: output, shape index: {}]
  %s12 = sld [smem:[#allocation0]]
  $region90: #{tpu_custom_call.1} parent=0
    _
  %s14 = ssub.s32 1, %s12
  %s15 = scalar_select 0, %s14, %s12
  $region1: #{tpu_custom_call.1} parent=0
    #allocation2 [shape = 'u8[4096]{0}', space=vmem, size = 0x1000, scoped, tag = 'input window, operand 0, single buffered']
    #allocation3 [shape = 's32[1]{0}', space=sflag, size = 0x4, scoped, tag = 'scoped memory for tpu_custom_call.1']
    #allocation4 [shape = 's32[1]{0}', space=sflag, size = 0x4, scoped, tag = 'scoped memory for tpu_custom_call.1']
    #allocation5 [shape = 'u8[8192]{0}', space=vmem, size = 0x2000, scoped, tag = 'input window, operand 1, single buffered']
    #allocation6 [shape = 's32[1]{0}', space=sflag, size = 0x4, scoped, tag = 'scoped memory for tpu_custom_call.1']
    #allocation7 [shape = 'u8[8192]{0}', space=vmem, size = 0x2000, scoped, tag = 'input window, operand 2, single buffered']
    #allocation8 [shape = 'u8[8192]{0}', space=vmem, size = 0x2000, scoped, tag = 'input window, operand 3, single buffered']
    #allocation9 [shape = 's32[1]{0}', space=sflag, size = 0x4, scoped, tag = 'scoped memory for tpu_custom_call.1']
    #allocation10 [shape = 'u8[65536]{0}', space=vmem, size = 0x10000, scoped, tag = 'input window, operand 4, single buffered']
    #allocation11 [shape = 'u8[98304]{0}', space=vmem, size = 0x18000, scoped, tag = 'input window, operand 5, single buffered']
    #allocation12 [shape = 's32[1]{0}', space=sflag, size = 0x4, scoped, tag = 'scoped memory for tpu_custom_call.1']
    #allocation13 [shape = 'u8[131072]{0}', space=vmem, size = 0x20000, scoped, tag = 'input window, operand 6, single buffered']
    #allocation14 [shape = 'u8[131072]{0}', space=vmem, size = 0x20000, scoped, tag = 'input window, operand 7, single buffered']
    #allocation15 [shape = 's32[1]{0}', space=sflag, size = 0x4, scoped, tag = 'scoped memory for tpu_custom_call.1']
    #allocation16 [shape = 'u8[262144]{0}', space=vmem, size = 0x40000, scoped, tag = 'input window, operand 9, single buffered']
    #allocation17 [shape = 'u8[16384]{0}', space=vmem, size = 0x4000, scoped, tag = 'output window, operand 0, single buffered']
    %16 = vsyncpa [#allocation3], 0
    %17 = vsyncpa [#allocation6], 0
    %18 = vsyncpa [#allocation9], 0
    %19 = vsyncpa [#allocation12], 0
    %20 = vsyncpa [#allocation15], 0
    %21 = vsyncpa [#allocation4], 0
    // Predicated region
    $region2: #{tpu_custom_call.1} parent=1 // pred_check
      _
    $region3: #{tpu_custom_call.1} parent=1 // pred_check_branch
      %23 = sbr.rel (0) target = $region5
    $region4: #{tpu_custom_call.1} parent=1 // pred_region
      %s25 = ssub.s32 128, 128
      %26 = vsyncadd [#allocation3], %s25
      %s28 = sshll.u32 [#allocation2], 4
      %s29 = int_to_ptr.vmem [resolvable:$true] %s28
      %31 = dma.hbm_to_vmem [thread:$0]  %s0, 128, %s29, [#allocation3]
    $region5: #{tpu_custom_call.1} parent=1 // pred_fallthru
      _
    // Predicated region
    $region6: #{tpu_custom_call.1} parent=1 // pred_check
      _
    $region7: #{tpu_custom_call.1} parent=1 // pred_check_branch
      %33 = sbr.rel (0) target = $region9
    $region8: #{tpu_custom_call.1} parent=1 // pred_region
      %s35 = ssub.s32 256, 256
      %36 = vsyncadd [#allocation6], %s35
      %s38 = sshll.u32 [#allocation5], 4
      %s39 = int_to_ptr.vmem [resolvable:$true] %s38
      %41 = dma.hbm_to_vmem [thread:$0]  %s1, 256, %s39, [#allocation6]
    $region9: #{tpu_custom_call.1} parent=1 // pred_fallthru
      _
    // Predicated region
    $region10: #{tpu_custom_call.1} parent=1 // pred_check
      _
    $region11: #{tpu_custom_call.1} parent=1 // pred_check_branch
      %43 = sbr.rel (0) target = $region13
    $region12: #{tpu_custom_call.1} parent=1 // pred_region
      %s45 = ssub.s32 256, 256
      %46 = vsyncadd [#allocation6], %s45
      %s48 = sshll.u32 [#allocation7], 4
      %s49 = int_to_ptr.vmem [resolvable:$true] %s48
      %51 = dma.hbm_to_vmem [thread:$0]  %s2, 256, %s49, [#allocation6]
    $region13: #{tpu_custom_call.1} parent=1 // pred_fallthru
      _
    // Predicated region
    $region14: #{tpu_custom_call.1} parent=1 // pred_check
      _
    $region15: #{tpu_custom_call.1} parent=1 // pred_check_branch
      %53 = sbr.rel (0) target = $region17
    $region16: #{tpu_custom_call.1} parent=1 // pred_region
      %s55 = ssub.s32 256, 256
      %56 = vsyncadd [#allocation9], %s55
      %s58 = sshll.u32 [#allocation8], 4
      %s59 = int_to_ptr.vmem [resolvable:$true] %s58
      %61 = dma.hbm_to_vmem [thread:$0]  %s3, 256, %s59, [#allocation9]
    $region17: #{tpu_custom_call.1} parent=1 // pred_fallthru
      _
    // Predicated region
    $region18: #{tpu_custom_call.1} parent=1 // pred_check
      _
    $region19: #{tpu_custom_call.1} parent=1 // pred_check_branch
      %63 = sbr.rel (0) target = $region21
    $region20: #{tpu_custom_call.1} parent=1 // pred_region
      %s65 = ssub.s32 2048, 2048
      %66 = vsyncadd [#allocation9], %s65
      %s67 = sshll.u32 [#allocation10], 4
      %s68 = int_to_ptr.vmem [resolvable:$true] %s67
      %73 = dma.hbm_to_vmem [thread:$0]  %s4, 2048, %s68, [#allocation9], 128, 128, 8
    $region21: #{tpu_custom_call.1} parent=1 // pred_fallthru
      _
    // Predicated region
    $region22: #{tpu_custom_call.1} parent=1 // pred_check
      _
    $region23: #{tpu_custom_call.1} parent=1 // pred_check_branch
      %75 = sbr.rel (0) target = $region25
    $region24: #{tpu_custom_call.1} parent=1 // pred_region
      %s77 = ssub.s32 3072, 3072
      %78 = vsyncadd [#allocation12], %s77
      %s79 = sshll.u32 [#allocation11], 4
      %s80 = int_to_ptr.vmem [resolvable:$true] %s79
      %85 = dma.hbm_to_vmem [thread:$0]  %s5, 3072, %s80, [#allocation12], 128, 128, 8
    $region25: #{tpu_custom_call.1} parent=1 // pred_fallthru
      _
    // Predicated region
    $region26: #{tpu_custom_call.1} parent=1 // pred_check
      _
    $region27: #{tpu_custom_call.1} parent=1 // pred_check_branch
      %87 = sbr.rel (0) target = $region29
    $region28: #{tpu_custom_call.1} parent=1 // pred_region
      %s89 = ssub.s32 4096, 4096
      %90 = vsyncadd [#allocation12], %s89
      %s91 = sshll.u32 [#allocation13], 4
      %s92 = int_to_ptr.vmem [resolvable:$true] %s91
      %97 = dma.hbm_to_vmem [thread:$0]  %s6, 4096, %s92, [#allocation12], 128, 128, 8
    $region29: #{tpu_custom_call.1} parent=1 // pred_fallthru
      _
    // Predicated region
    $region30: #{tpu_custom_call.1} parent=1 // pred_check
      _
    $region31: #{tpu_custom_call.1} parent=1 // pred_check_branch
      %99 = sbr.rel (0) target = $region33
    $region32: #{tpu_custom_call.1} parent=1 // pred_region
      %s101 = ssub.s32 4096, 4096
      %102 = vsyncadd [#allocation15], %s101
      %s103 = sshll.u32 [#allocation14], 4
      %s104 = int_to_ptr.vmem [resolvable:$true] %s103
      %109 = dma.hbm_to_vmem [thread:$0]  %s7, 4096, %s104, [#allocation15], 128, 128, 8
    $region33: #{tpu_custom_call.1} parent=1 // pred_fallthru
      _
    // Predicated region
    $region34: #{tpu_custom_call.1} parent=1 // pred_check
      _
    $region35: #{tpu_custom_call.1} parent=1 // pred_check_branch
      %111 = sbr.rel (0) target = $region37
    $region36: #{tpu_custom_call.1} parent=1 // pred_region
      _
    $region37: #{tpu_custom_call.1} parent=1 // pred_fallthru
      _
    // Predicated region
    $region38: #{tpu_custom_call.1} parent=1 // pred_check
      _
    $region39: #{tpu_custom_call.1} parent=1 // pred_check_branch
      %113 = sbr.rel (0) target = $region41
    $region40: #{tpu_custom_call.1} parent=1 // pred_region
      %s115 = ssub.s32 8192, 8192
      %116 = vsyncadd [#allocation15], %s115
      %s117 = sshll.u32 [#allocation16], 4
      %s118 = int_to_ptr.vmem [resolvable:$true] %s117
      %123 = dma.hbm_to_vmem [thread:$0]  %s9, 8192, %s118, [#allocation15], 64, 64, 4
    $region41: #{tpu_custom_call.1} parent=1 // pred_fallthru
      _
    // Predicated region
    $region42: #{tpu_custom_call.1} parent=1 // pred_check
      _
    $region43: #{tpu_custom_call.1} parent=1 // pred_check_branch
      %125 = sbr.rel (0) target = $region45
    $region44: #{tpu_custom_call.1} parent=1 // pred_region
      _
    $region45: #{tpu_custom_call.1} parent=1 // pred_fallthru
      _
    // Predicated region
    $region46: #{tpu_custom_call.1} parent=1 // pred_check
      _
    $region47: #{tpu_custom_call.1} parent=1 // pred_check_branch
      %127 = sbr.rel (0) target = $region49
    $region48: #{tpu_custom_call.1} parent=1 // pred_region
      %128 = dma.done [#allocation3], 128
    $region49: #{tpu_custom_call.1} parent=1 // pred_fallthru
      _
    // Predicated region
    $region50: #{tpu_custom_call.1} parent=1 // pred_check
      _
    $region51: #{tpu_custom_call.1} parent=1 // pred_check_branch
      %130 = sbr.rel (0) target = $region53
    $region52: #{tpu_custom_call.1} parent=1 // pred_region
      %131 = dma.done [#allocation6], 256
    $region53: #{tpu_custom_call.1} parent=1 // pred_fallthru
      _
    // Predicated region
    $region54: #{tpu_custom_call.1} parent=1 // pred_check
      _
    $region55: #{tpu_custom_call.1} parent=1 // pred_check_branch
      %133 = sbr.rel (0) target = $region57
    $region56: #{tpu_custom_call.1} parent=1 // pred_region
      %134 = dma.done [#allocation6], 256
    $region57: #{tpu_custom_call.1} parent=1 // pred_fallthru
      _
    // Predicated region
    $region58: #{tpu_custom_call.1} parent=1 // pred_check
      _
    $region59: #{tpu_custom_call.1} parent=1 // pred_check_branch
      %136 = sbr.rel (0) target = $region61
    $region60: #{tpu_custom_call.1} parent=1 // pred_region
      %137 = dma.done [#allocation9], 256
    $region61: #{tpu_custom_call.1} parent=1 // pred_fallthru
      _
    // Predicated region
    $region62: #{tpu_custom_call.1} parent=1 // pred_check
      _
    $region63: #{tpu_custom_call.1} parent=1 // pred_check_branch
      %139 = sbr.rel (0) target = $region65
    $region64: #{tpu_custom_call.1} parent=1 // pred_region
      %140 = dma.done [#allocation9], 2048
    $region65: #{tpu_custom_call.1} parent=1 // pred_fallthru
      _
    // Predicated region
    $region66: #{tpu_custom_call.1} parent=1 // pred_check
      _
    $region67: #{tpu_custom_call.1} parent=1 // pred_check_branch
      %142 = sbr.rel (0) target = $region69
    $region68: #{tpu_custom_call.1} parent=1 // pred_region
      %143 = dma.done [#allocation12], 3072
    $region69: #{tpu_custom_call.1} parent=1 // pred_fallthru
      _
    // Predicated region
    $region70: #{tpu_custom_call.1} parent=1 // pred_check
      _
    $region71: #{tpu_custom_call.1} parent=1 // pred_check_branch
      %145 = sbr.rel (0) target = $region73
    $region72: #{tpu_custom_call.1} parent=1 // pred_region
      %146 = dma.done [#allocation12], 4096
    $region73: #{tpu_custom_call.1} parent=1 // pred_fallthru
      _
    // Predicated region
    $region74: #{tpu_custom_call.1} parent=1 // pred_check
      _
    $region75: #{tpu_custom_call.1} parent=1 // pred_check_branch
      %148 = sbr.rel (0) target = $region77
    $region76: #{tpu_custom_call.1} parent=1 // pred_region
      %149 = dma.done [#allocation15], 4096
    $region77: #{tpu_custom_call.1} parent=1 // pred_fallthru
      _
    // Predicated region
    $region78: #{tpu_custom_call.1} parent=1 // pred_check
      _
    $region79: #{tpu_custom_call.1} parent=1 // pred_check_branch
      %151 = sbr.rel (0) target = $region81
    $region80: #{tpu_custom_call.1} parent=1 // pred_region
      %152 = dma.done [#allocation15], 8192
    $region81: #{tpu_custom_call.1} parent=1 // pred_fallthru
      _
    %v154 = vld [vmem:[#allocation2] sm:$0xff]
    %v155 = vpack.c.bf16 %v154, %v154
    %v156 = vld [vmem:[#allocation10] sm:$0xff]
    %v157 = vld [vmem:[#allocation10 + $0x8] sm:$0xff]
    %v158 = vld [vmem:[#allocation10 + $0x10] sm:$0xff]
    %v159 = vld [vmem:[#allocation10 + $0x18] sm:$0xff]
    %v160 = vld [vmem:[#allocation10 + $0x20] sm:$0xff]
    %v161 = vld [vmem:[#allocation10 + $0x28] sm:$0xff]
    %v162 = vld [vmem:[#allocation10 + $0x30] sm:$0xff]
    %v163 = vld [vmem:[#allocation10 + $0x38] sm:$0xff]
    %v164 = vld [vmem:[#allocation10 + $0x40] sm:$0xff]
    %v165 = vld [vmem:[#allocation10 + $0x48] sm:$0xff]
    %v166 = vld [vmem:[#allocation10 + $0x50] sm:$0xff]
    %v167 = vld [vmem:[#allocation10 + $0x58] sm:$0xff]
    %v168 = vld [vmem:[#allocation10 + $0x60] sm:$0xff]
    %v169 = vld [vmem:[#allocation10 + $0x68] sm:$0xff]
    %v170 = vld [vmem:[#allocation10 + $0x70] sm:$0xff]
    %v171 = vld [vmem:[#allocation10 + $0x78] sm:$0xff]
    %v172 = vld [vmem:[%s8] sm:$0x3]
    %v174 = vlaneseq
    %v175 = vshrl.u32 %v174, 7
    %v176 = vsub.s32 0, %v175
    %v177 = vrot.slane %v172, %v176
    %v178 = vlaneseq
    %v179 = vshrl.u32 %v178, 7
    %v180 = vsub.s32 1, %v179
    %v181 = vrot.slane %v172, %v180
    %v200 = vunpack.c.l.b16 %v156
    %v201 = vunpack.c.h.b16 %v156
    %v202 = vunpack.c.l.b16 %v157
    %v203 = vunpack.c.h.b16 %v157
    %v204 = vunpack.c.l.b16 %v158
    %v205 = vunpack.c.h.b16 %v158
    %v206 = vunpack.c.l.b16 %v159
    %v207 = vunpack.c.h.b16 %v159
    %v208 = vunpack.c.l.b16 %v160
    %v209 = vunpack.c.h.b16 %v160
    %v210 = vunpack.c.l.b16 %v161
    %v211 = vunpack.c.h.b16 %v161
    %v212 = vunpack.c.l.b16 %v162
    %v213 = vunpack.c.h.b16 %v162
    %v214 = vunpack.c.l.b16 %v163
    %v215 = vunpack.c.h.b16 %v163
    %v216 = vunpack.c.l.b16 %v164
    %v217 = vunpack.c.h.b16 %v164
    %v218 = vunpack.c.l.b16 %v165
    %v219 = vunpack.c.h.b16 %v165
    %v220 = vunpack.c.l.b16 %v166
    %v221 = vunpack.c.h.b16 %v166
    %v222 = vunpack.c.l.b16 %v167
    %v223 = vunpack.c.h.b16 %v167
    %v224 = vunpack.c.l.b16 %v168
    %v225 = vunpack.c.h.b16 %v168
    %v226 = vunpack.c.l.b16 %v169
    %v227 = vunpack.c.h.b16 %v169
    %v228 = vunpack.c.l.b16 %v170
    %v229 = vunpack.c.h.b16 %v170
    %v230 = vunpack.c.l.b16 %v171
    %v231 = vunpack.c.h.b16 %v171
    %v232 = vpack.c.b16 %v202, %v200
    %v233 = vpack.c.b16 %v203, %v201
    %v234 = vpack.c.b16 %v206, %v204
    %v235 = vpack.c.b16 %v207, %v205
    %v236 = vpack.c.b16 %v210, %v208
    %v237 = vpack.c.b16 %v211, %v209
    %v238 = vpack.c.b16 %v214, %v212
    %v239 = vpack.c.b16 %v215, %v213
    %v240 = vpack.c.b16 %v218, %v216
    %v241 = vpack.c.b16 %v219, %v217
    %v242 = vpack.c.b16 %v222, %v220
    %v243 = vpack.c.b16 %v223, %v221
    %v244 = vpack.c.b16 %v226, %v224
    %v245 = vpack.c.b16 %v227, %v225
    %v246 = vpack.c.b16 %v230, %v228
    %v247 = vpack.c.b16 %v231, %v229
    %264 = vmatprep.subr.bf16.mxu0 %v247
    %265 = vmatpush1.bf16.msra.mxu0 %v246
    %266 = vmatprep.subr.bf16.mxu0 %v245
    %267 = vmatpush1.bf16.msra.mxu0 %v244
    %268 = vmatprep.subr.bf16.mxu0 %v243
    %269 = vmatpush1.bf16.msra.mxu0 %v242
    %270 = vmatprep.subr.bf16.mxu0 %v241
    %271 = vmatpush1.bf16.msra.mxu0 %v240
    %272 = vmatprep.subr.bf16.mxu0 %v239
    %273 = vmatpush1.bf16.msra.mxu0 %v238
    %274 = vmatprep.subr.bf16.mxu0 %v237
    %275 = vmatpush1.bf16.msra.mxu0 %v236
    %276 = vmatprep.subr.bf16.mxu0 %v235
    %277 = vmatpush1.bf16.msra.mxu0 %v234
    %278 = vmatprep.subr.bf16.mxu0 %v233
    %279 = vmatpush1.bf16.msra.mxu0 %v232
    %280 = vmatprep.subr.bf16.mxu0 0
    %281 = vmatpush2.bf16.msra.mxu0 0
    %282 = vmatprep.subr.bf16.mxu0 0
    %283 = vmatpush2.bf16.msra.mxu0 0
    %284 = vmatprep.subr.bf16.mxu0 0
    %285 = vmatpush2.bf16.msra.mxu0 0
    %286 = vmatprep.subr.bf16.mxu0 0
    %287 = vmatpush2.bf16.msra.mxu0 0
    %288 = vmatprep.subr.bf16.mxu0 0
    %289 = vmatpush2.bf16.msra.mxu0 0
    %290 = vmatprep.subr.bf16.mxu0 0
    %291 = vmatpush2.bf16.msra.mxu0 0
    %292 = vmatprep.subr.bf16.mxu0 0
    %293 = vmatpush2.bf16.msra.mxu0 0
    %294 = vmatprep.subr.bf16.mxu0 0
    %295 = vmatpush2.bf16.msra.mxu0 0
    %296 = vmatprep.mubr.bf16.mxu0 0
    %297 = vmatmul.mubr.bf16.gmra.mxu0 %v155
    %v298 = vpop.f32.mrf.mxu0
    %v299 = vadd.f32 %v177, %v298
    %v300 = vpop.f32.mrf.mxu0
    %v301 = vadd.f32 %v181, %v300
    %v302 = vpop.f32.mrf.mxu0
    %v303 = vpop.f32.mrf.mxu0
    %304 = vdwg.mxu0
    %v305 = vmax.f32 %v299, 0.0
    %v306 = vmax.f32 %v301, 0.0
    %v307 = vpack.c.bf16 %v305, %v305
    %v308 = vpack.c.bf16 %v306, %v306
    %v309 = vld [vmem:[#allocation16] sm:$0xf]
    %v310 = vld [vmem:[#allocation16 + $0x4] sm:$0xf]
    %v311 = vld [vmem:[#allocation16 + $0x8] sm:$0xf]
    %v312 = vld [vmem:[#allocation16 + $0xc] sm:$0xf]
    %v313 = vld [vmem:[#allocation16 + $0x10] sm:$0xf]
    %v314 = vld [vmem:[#allocation16 + $0x14] sm:$0xf]
    %v315 = vld [vmem:[#allocation16 + $0x18] sm:$0xf]
    %v316 = vld [vmem:[#allocation16 + $0x1c] sm:$0xf]
    %v317 = vld [vmem:[#allocation16 + $0x20] sm:$0xf]
    %v318 = vld [vmem:[#allocation16 + $0x24] sm:$0xf]
    %v319 = vld [vmem:[#allocation16 + $0x28] sm:$0xf]
    %v320 = vld [vmem:[#allocation16 + $0x2c] sm:$0xf]
    %v321 = vld [vmem:[#allocation16 + $0x30] sm:$0xf]
    %v322 = vld [vmem:[#allocation16 + $0x34] sm:$0xf]
    %v323 = vld [vmem:[#allocation16 + $0x38] sm:$0xf]
    %v324 = vld [vmem:[#allocation16 + $0x3c] sm:$0xf]
    %v325 = vld [vmem:[#allocation16 + $0x40] sm:$0xf]
    %v326 = vld [vmem:[#allocation16 + $0x44] sm:$0xf]
    %v327 = vld [vmem:[#allocation16 + $0x48] sm:$0xf]
    %v328 = vld [vmem:[#allocation16 + $0x4c] sm:$0xf]
    %v329 = vld [vmem:[#allocation16 + $0x50] sm:$0xf]
    %v330 = vld [vmem:[#allocation16 + $0x54] sm:$0xf]
    %v331 = vld [vmem:[#allocation16 + $0x58] sm:$0xf]
    %v332 = vld [vmem:[#allocation16 + $0x5c] sm:$0xf]
    %v333 = vld [vmem:[#allocation16 + $0x60] sm:$0xf]
    %v334 = vld [vmem:[#allocation16 + $0x64] sm:$0xf]
    %v335 = vld [vmem:[#allocation16 + $0x68] sm:$0xf]
    %v336 = vld [vmem:[#allocation16 + $0x6c] sm:$0xf]
    %v337 = vld [vmem:[#allocation16 + $0x70] sm:$0xf]
    %v338 = vld [vmem:[#allocation16 + $0x74] sm:$0xf]
    %v339 = vld [vmem:[#allocation16 + $0x78] sm:$0xf]
    %v340 = vld [vmem:[#allocation16 + $0x7c] sm:$0xf]
    %v341 = vld [vmem:[%s10] sm:$0x1]
    %v343 = vlaneseq
    %v344 = vshrl.u32 %v343, 7
    %v345 = vsub.s32 0, %v344
    %v346 = vrot.slane %v341, %v345
    %v380 = vunpack.c.l.b16 %v309
    %v381 = vunpack.c.l.b16 %v310
    %v382 = vunpack.c.l.b16 %v311
    %v383 = vunpack.c.l.b16 %v312
    %v384 = vunpack.c.l.b16 %v313
    %v385 = vunpack.c.l.b16 %v314
    %v386 = vunpack.c.l.b16 %v315
    %v387 = vunpack.c.l.b16 %v316
    %v388 = vunpack.c.l.b16 %v317
    %v389 = vunpack.c.l.b16 %v318
    %v390 = vunpack.c.l.b16 %v319
    %v391 = vunpack.c.l.b16 %v320
    %v392 = vunpack.c.l.b16 %v321
    %v393 = vunpack.c.l.b16 %v322
    %v394 = vunpack.c.l.b16 %v323
    %v395 = vunpack.c.l.b16 %v324
    %v396 = vunpack.c.l.b16 %v325
    %v397 = vunpack.c.l.b16 %v326
    %v398 = vunpack.c.l.b16 %v327
    %v399 = vunpack.c.l.b16 %v328
    %v400 = vunpack.c.l.b16 %v329
    %v401 = vunpack.c.l.b16 %v330
    %v402 = vunpack.c.l.b16 %v331
    %v403 = vunpack.c.l.b16 %v332
    %v404 = vunpack.c.l.b16 %v333
    %v405 = vunpack.c.l.b16 %v334
    %v406 = vunpack.c.l.b16 %v335
    %v407 = vunpack.c.l.b16 %v336
    %v408 = vunpack.c.l.b16 %v337
    %v409 = vunpack.c.l.b16 %v338
    %v410 = vunpack.c.l.b16 %v339
    %v411 = vunpack.c.l.b16 %v340
    %v412 = vpack.c.b16 %v381, %v380
    %v413 = vpack.c.b16 %v383, %v382
    %v414 = vpack.c.b16 %v385, %v384
    %v415 = vpack.c.b16 %v387, %v386
    %v416 = vpack.c.b16 %v389, %v388
    %v417 = vpack.c.b16 %v391, %v390
    %v418 = vpack.c.b16 %v393, %v392
    %v419 = vpack.c.b16 %v395, %v394
    %v420 = vpack.c.b16 %v397, %v396
    %v421 = vpack.c.b16 %v399, %v398
    %v422 = vpack.c.b16 %v401, %v400
    %v423 = vpack.c.b16 %v403, %v402
    %v424 = vpack.c.b16 %v405, %v404
    %v425 = vpack.c.b16 %v407, %v406
    %v426 = vpack.c.b16 %v409, %v408
    %v427 = vpack.c.b16 %v411, %v410
    %444 = vmatprep.subr.bf16.mxu0 0
    %445 = vmatpush1.bf16.msra.mxu0 %v419
    %446 = vmatprep.subr.bf16.mxu0 0
    %447 = vmatpush1.bf16.msra.mxu0 %v418
    %448 = vmatprep.subr.bf16.mxu0 0
    %449 = vmatpush1.bf16.msra.mxu0 %v417
    %450 = vmatprep.subr.bf16.mxu0 0
    %451 = vmatpush1.bf16.msra.mxu0 %v416
    %452 = vmatprep.subr.bf16.mxu0 0
    %453 = vmatpush1.bf16.msra.mxu0 %v415
    %454 = vmatprep.subr.bf16.mxu0 0
    %455 = vmatpush1.bf16.msra.mxu0 %v414
    %456 = vmatprep.subr.bf16.mxu0 0
    %457 = vmatpush1.bf16.msra.mxu0 %v413
    %458 = vmatprep.subr.bf16.mxu0 0
    %459 = vmatpush1.bf16.msra.mxu0 %v412
    %460 = vmatprep.subr.bf16.mxu0 0
    %461 = vmatpush2.bf16.msra.mxu0 %v427
    %462 = vmatprep.subr.bf16.mxu0 0
    %463 = vmatpush2.bf16.msra.mxu0 %v426
    %464 = vmatprep.subr.bf16.mxu0 0
    %465 = vmatpush2.bf16.msra.mxu0 %v425
    %466 = vmatprep.subr.bf16.mxu0 0
    %467 = vmatpush2.bf16.msra.mxu0 %v424
    %468 = vmatprep.subr.bf16.mxu0 0
    %469 = vmatpush2.bf16.msra.mxu0 %v423
    %470 = vmatprep.subr.bf16.mxu0 0
    %471 = vmatpush2.bf16.msra.mxu0 %v422
    %472 = vmatprep.subr.bf16.mxu0 0
    %473 = vmatpush2.bf16.msra.mxu0 %v421
    %474 = vmatprep.subr.bf16.mxu0 0
    %475 = vmatpush2.bf16.msra.mxu0 %v420
    %476 = vmatprep.mubr.bf16.mxu0 %v308
    %477 = vmatmul.mubr.bf16.gmra.mxu0 %v307
    %v478 = vpop.f32.mrf.mxu0
    %v479 = vadd.f32 %v346, %v478
    %v480 = vpop.f32.mrf.mxu0
    %v481 = vpop.f32.mrf.mxu0
    %v482 = vpop.f32.mrf.mxu0
    %483 = vdwg.mxu0
    %484 = vst [vmem:[#allocation17] sm:$0xff] %v479
    %v485 = vld [vmem:[#allocation5] sm:$0xff]
    %v486 = vld [vmem:[#allocation5 + $0x8] sm:$0xff]
    %v487 = vpack.c.bf16 %v485, %v485
    %v488 = vpack.c.bf16 %v486, %v486
    %v489 = vld [vmem:[#allocation11] sm:$0xff]
    %v490 = vld [vmem:[#allocation11 + $0x8] sm:$0xff]
    %v491 = vld [vmem:[#allocation11 + $0x10] sm:$0xff]
    %v492 = vld [vmem:[#allocation11 + $0x18] sm:$0xff]
    %v493 = vld [vmem:[#allocation11 + $0x20] sm:$0xff]
    %v494 = vld [vmem:[#allocation11 + $0x28] sm:$0xff]
    %v495 = vld [vmem:[#allocation11 + $0x30] sm:$0xff]
    %v496 = vld [vmem:[#allocation11 + $0x38] sm:$0xff]
    %v497 = vld [vmem:[#allocation11 + $0x40] sm:$0xff]
    %v498 = vld [vmem:[#allocation11 + $0x48] sm:$0xff]
    %v499 = vld [vmem:[#allocation11 + $0x50] sm:$0xff]
    %v500 = vld [vmem:[#allocation11 + $0x58] sm:$0xff]
    %v501 = vld [vmem:[#allocation11 + $0x60] sm:$0xff]
    %v502 = vld [vmem:[#allocation11 + $0x68] sm:$0xff]
    %v503 = vld [vmem:[#allocation11 + $0x70] sm:$0xff]
    %v504 = vld [vmem:[#allocation11 + $0x78] sm:$0xff]
    %v505 = vld [vmem:[#allocation11 + $0x80] sm:$0xff]
    %v506 = vld [vmem:[#allocation11 + $0x88] sm:$0xff]
    %v507 = vld [vmem:[#allocation11 + $0x90] sm:$0xff]
    %v508 = vld [vmem:[#allocation11 + $0x98] sm:$0xff]
    %v509 = vld [vmem:[#allocation11 + $0xa0] sm:$0xff]
    %v510 = vld [vmem:[#allocation11 + $0xa8] sm:$0xff]
    %v511 = vld [vmem:[#allocation11 + $0xb0] sm:$0xff]
    %v512 = vld [vmem:[#allocation11 + $0xb8] sm:$0xff]
    %s513 = scalar_lea.vmem %s8, 2
    %v514 = vld [vmem:[%s513] sm:$0x3]
    %v516 = vlaneseq
    %v517 = vshrl.u32 %v516, 7
    %v518 = vsub.s32 0, %v517
    %v519 = vrot.slane %v514, %v518
    %v520 = vlaneseq
    %v521 = vshrl.u32 %v520, 7
    %v522 = vsub.s32 1, %v521
    %v523 = vrot.slane %v514, %v522
    %v550 = vunpack.c.l.b16 %v489
    %v551 = vunpack.c.h.b16 %v489
    %v552 = vunpack.c.l.b16 %v490
    %v553 = vunpack.c.h.b16 %v490
    %v554 = vunpack.c.l.b16 %v491
    %v555 = vunpack.c.h.b16 %v491
    %v556 = vunpack.c.l.b16 %v492
    %v557 = vunpack.c.h.b16 %v492
    %v558 = vunpack.c.l.b16 %v493
    %v559 = vunpack.c.h.b16 %v493
    %v560 = vunpack.c.l.b16 %v494
    %v561 = vunpack.c.h.b16 %v494
    %v562 = vunpack.c.l.b16 %v495
    %v563 = vunpack.c.h.b16 %v495
    %v564 = vunpack.c.l.b16 %v496
    %v565 = vunpack.c.h.b16 %v496
    %v566 = vunpack.c.l.b16 %v497
    %v567 = vunpack.c.h.b16 %v497
    %v568 = vunpack.c.l.b16 %v498
    %v569 = vunpack.c.h.b16 %v498
    %v570 = vunpack.c.l.b16 %v499
    %v571 = vunpack.c.h.b16 %v499
    %v572 = vunpack.c.l.b16 %v500
    %v573 = vunpack.c.h.b16 %v500
    %v574 = vunpack.c.l.b16 %v501
    %v575 = vunpack.c.h.b16 %v501
    %v576 = vunpack.c.l.b16 %v502
    %v577 = vunpack.c.h.b16 %v502
    %v578 = vunpack.c.l.b16 %v503
    %v579 = vunpack.c.h.b16 %v503
    %v580 = vunpack.c.l.b16 %v504
    %v581 = vunpack.c.h.b16 %v504
    %v582 = vunpack.c.l.b16 %v505
    %v583 = vunpack.c.h.b16 %v505
    %v584 = vunpack.c.l.b16 %v506
    %v585 = vunpack.c.h.b16 %v506
    %v586 = vunpack.c.l.b16 %v507
    %v587 = vunpack.c.h.b16 %v507
    %v588 = vunpack.c.l.b16 %v508
    %v589 = vunpack.c.h.b16 %v508
    %v590 = vunpack.c.l.b16 %v509
    %v591 = vunpack.c.h.b16 %v509
    %v592 = vunpack.c.l.b16 %v510
    %v593 = vunpack.c.h.b16 %v510
    %v594 = vunpack.c.l.b16 %v511
    %v595 = vunpack.c.h.b16 %v511
    %v596 = vunpack.c.l.b16 %v512
    %v597 = vunpack.c.h.b16 %v512
    %v598 = vpack.c.b16 %v552, %v550
    %v599 = vpack.c.b16 %v553, %v551
    %v600 = vpack.c.b16 %v556, %v554
    %v601 = vpack.c.b16 %v557, %v555
    %v602 = vpack.c.b16 %v560, %v558
    %v603 = vpack.c.b16 %v561, %v559
    %v604 = vpack.c.b16 %v564, %v562
    %v605 = vpack.c.b16 %v565, %v563
    %v606 = vpack.c.b16 %v568, %v566
    %v607 = vpack.c.b16 %v569, %v567
    %v608 = vpack.c.b16 %v572, %v570
    %v609 = vpack.c.b16 %v573, %v571
    %v610 = vpack.c.b16 %v576, %v574
    %v611 = vpack.c.b16 %v577, %v575
    %v612 = vpack.c.b16 %v580, %v578
    %v613 = vpack.c.b16 %v581, %v579
    %v614 = vpack.c.b16 %v584, %v582
    %v615 = vpack.c.b16 %v585, %v583
    %v616 = vpack.c.b16 %v588, %v586
    %v617 = vpack.c.b16 %v589, %v587
    %v618 = vpack.c.b16 %v592, %v590
    %v619 = vpack.c.b16 %v593, %v591
    %v620 = vpack.c.b16 %v596, %v594
    %v621 = vpack.c.b16 %v597, %v595
    %vm646 = vcmask 523264
    %v648 = vsel %vm646, %v488, 0
    %650 = vmatprep.subr.bf16.mxu0 %v613
    %651 = vmatpush1.bf16.msra.mxu0 %v612
    %652 = vmatprep.subr.bf16.mxu0 %v611
    %653 = vmatpush1.bf16.msra.mxu0 %v610
    %654 = vmatprep.subr.bf16.mxu0 %v609
    %655 = vmatpush1.bf16.msra.mxu0 %v608
    %656 = vmatprep.subr.bf16.mxu0 %v607
    %657 = vmatpush1.bf16.msra.mxu0 %v606
    %658 = vmatprep.subr.bf16.mxu0 %v605
    %659 = vmatpush1.bf16.msra.mxu0 %v604
    %660 = vmatprep.subr.bf16.mxu0 %v603
    %661 = vmatpush1.bf16.msra.mxu0 %v602
    %662 = vmatprep.subr.bf16.mxu0 %v601
    %663 = vmatpush1.bf16.msra.mxu0 %v600
    %664 = vmatprep.subr.bf16.mxu0 %v599
    %665 = vmatpush1.bf16.msra.mxu0 %v598
    %666 = vmatprep.subr.bf16.mxu0 0
    %667 = vmatpush2.bf16.msra.mxu0 0
    %668 = vmatprep.subr.bf16.mxu0 0
    %669 = vmatpush2.bf16.msra.mxu0 0
    %670 = vmatprep.subr.bf16.mxu0 0
    %671 = vmatpush2.bf16.msra.mxu0 0
    %672 = vmatprep.subr.bf16.mxu0 0
    %673 = vmatpush2.bf16.msra.mxu0 0
    %674 = vmatprep.subr.bf16.mxu0 %v621
    %675 = vmatpush2.bf16.msra.mxu0 %v620
    %676 = vmatprep.subr.bf16.mxu0 %v619
    %677 = vmatpush2.bf16.msra.mxu0 %v618
    %678 = vmatprep.subr.bf16.mxu0 %v617
    %679 = vmatpush2.bf16.msra.mxu0 %v616
    %680 = vmatprep.subr.bf16.mxu0 %v615
    %681 = vmatpush2.bf16.msra.mxu0 %v614
    %682 = vmatprep.mubr.bf16.mxu0 %v648
    %683 = vmatmul.mubr.bf16.gmra.mxu0 %v487
    %v684 = vpop.f32.mrf.mxu0
    %v685 = vadd.f32 %v519, %v684
    %v686 = vpop.f32.mrf.mxu0
    %v687 = vadd.f32 %v523, %v686
    %v688 = vpop.f32.mrf.mxu0
    %v689 = vpop.f32.mrf.mxu0
    %690 = vdwg.mxu0
    %v691 = vmax.f32 %v685, 0.0
    %v692 = vmax.f32 %v687, 0.0
    %v693 = vpack.c.bf16 %v691, %v691
    %v694 = vpack.c.bf16 %v692, %v692
    %s695 = scalar_lea.vmem [#allocation16], 128
    %v696 = vld [vmem:[%s695] sm:$0xf]
    %v697 = vld [vmem:[%s695 + $0x4] sm:$0xf]
    %v698 = vld [vmem:[%s695 + $0x8] sm:$0xf]
    %v699 = vld [vmem:[%s695 + $0xc] sm:$0xf]
    %v700 = vld [vmem:[%s695 + $0x10] sm:$0xf]
    %v701 = vld [vmem:[%s695 + $0x14] sm:$0xf]
    %v702 = vld [vmem:[%s695 + $0x18] sm:$0xf]
    %v703 = vld [vmem:[%s695 + $0x1c] sm:$0xf]
    %v704 = vld [vmem:[%s695 + $0x20] sm:$0xf]
    %v705 = vld [vmem:[%s695 + $0x24] sm:$0xf]
    %v706 = vld [vmem:[%s695 + $0x28] sm:$0xf]
    %v707 = vld [vmem:[%s695 + $0x2c] sm:$0xf]
    %v708 = vld [vmem:[%s695 + $0x30] sm:$0xf]
    %v709 = vld [vmem:[%s695 + $0x34] sm:$0xf]
    %v710 = vld [vmem:[%s695 + $0x38] sm:$0xf]
    %v711 = vld [vmem:[%s695 + $0x3c] sm:$0xf]
    %v712 = vld [vmem:[%s695 + $0x40] sm:$0xf]
    %v713 = vld [vmem:[%s695 + $0x44] sm:$0xf]
    %v714 = vld [vmem:[%s695 + $0x48] sm:$0xf]
    %v715 = vld [vmem:[%s695 + $0x4c] sm:$0xf]
    %v716 = vld [vmem:[%s695 + $0x50] sm:$0xf]
    %v717 = vld [vmem:[%s695 + $0x54] sm:$0xf]
    %v718 = vld [vmem:[%s695 + $0x58] sm:$0xf]
    %v719 = vld [vmem:[%s695 + $0x5c] sm:$0xf]
    %v720 = vld [vmem:[%s695 + $0x60] sm:$0xf]
    %v721 = vld [vmem:[%s695 + $0x64] sm:$0xf]
    %v722 = vld [vmem:[%s695 + $0x68] sm:$0xf]
    %v723 = vld [vmem:[%s695 + $0x6c] sm:$0xf]
    %v724 = vld [vmem:[%s695 + $0x70] sm:$0xf]
    %v725 = vld [vmem:[%s695 + $0x74] sm:$0xf]
    %v726 = vld [vmem:[%s695 + $0x78] sm:$0xf]
    %v727 = vld [vmem:[%s695 + $0x7c] sm:$0xf]
    %s728 = scalar_lea.vmem %s10, 1
    %v729 = vld [vmem:[%s728] sm:$0x1]
    %v731 = vlaneseq
    %v732 = vshrl.u32 %v731, 7
    %v733 = vsub.s32 0, %v732
    %v734 = vrot.slane %v729, %v733
    %v768 = vunpack.c.l.b16 %v696
    %v769 = vunpack.c.l.b16 %v697
    %v770 = vunpack.c.l.b16 %v698
    %v771 = vunpack.c.l.b16 %v699
    %v772 = vunpack.c.l.b16 %v700
    %v773 = vunpack.c.l.b16 %v701
    %v774 = vunpack.c.l.b16 %v702
    %v775 = vunpack.c.l.b16 %v703
    %v776 = vunpack.c.l.b16 %v704
    %v777 = vunpack.c.l.b16 %v705
    %v778 = vunpack.c.l.b16 %v706
    %v779 = vunpack.c.l.b16 %v707
    %v780 = vunpack.c.l.b16 %v708
    %v781 = vunpack.c.l.b16 %v709
    %v782 = vunpack.c.l.b16 %v710
    %v783 = vunpack.c.l.b16 %v711
    %v784 = vunpack.c.l.b16 %v712
    %v785 = vunpack.c.l.b16 %v713
    %v786 = vunpack.c.l.b16 %v714
    %v787 = vunpack.c.l.b16 %v715
    %v788 = vunpack.c.l.b16 %v716
    %v789 = vunpack.c.l.b16 %v717
    %v790 = vunpack.c.l.b16 %v718
    %v791 = vunpack.c.l.b16 %v719
    %v792 = vunpack.c.l.b16 %v720
    %v793 = vunpack.c.l.b16 %v721
    %v794 = vunpack.c.l.b16 %v722
    %v795 = vunpack.c.l.b16 %v723
    %v796 = vunpack.c.l.b16 %v724
    %v797 = vunpack.c.l.b16 %v725
    %v798 = vunpack.c.l.b16 %v726
    %v799 = vunpack.c.l.b16 %v727
    %v800 = vpack.c.b16 %v769, %v768
    %v801 = vpack.c.b16 %v771, %v770
    %v802 = vpack.c.b16 %v773, %v772
    %v803 = vpack.c.b16 %v775, %v774
    %v804 = vpack.c.b16 %v777, %v776
    %v805 = vpack.c.b16 %v779, %v778
    %v806 = vpack.c.b16 %v781, %v780
    %v807 = vpack.c.b16 %v783, %v782
    %v808 = vpack.c.b16 %v785, %v784
    %v809 = vpack.c.b16 %v787, %v786
    %v810 = vpack.c.b16 %v789, %v788
    %v811 = vpack.c.b16 %v791, %v790
    %v812 = vpack.c.b16 %v793, %v792
    %v813 = vpack.c.b16 %v795, %v794
    %v814 = vpack.c.b16 %v797, %v796
    %v815 = vpack.c.b16 %v799, %v798
    %832 = vmatprep.subr.bf16.mxu0 0
    %833 = vmatpush1.bf16.msra.mxu0 %v807
    %834 = vmatprep.subr.bf16.mxu0 0
    %835 = vmatpush1.bf16.msra.mxu0 %v806
    %836 = vmatprep.subr.bf16.mxu0 0
    %837 = vmatpush1.bf16.msra.mxu0 %v805
    %838 = vmatprep.subr.bf16.mxu0 0
    %839 = vmatpush1.bf16.msra.mxu0 %v804
    %840 = vmatprep.subr.bf16.mxu0 0
    %841 = vmatpush1.bf16.msra.mxu0 %v803
    %842 = vmatprep.subr.bf16.mxu0 0
    %843 = vmatpush1.bf16.msra.mxu0 %v802
    %844 = vmatprep.subr.bf16.mxu0 0
    %845 = vmatpush1.bf16.msra.mxu0 %v801
    %846 = vmatprep.subr.bf16.mxu0 0
    %847 = vmatpush1.bf16.msra.mxu0 %v800
    %848 = vmatprep.subr.bf16.mxu0 0
    %849 = vmatpush2.bf16.msra.mxu0 %v815
    %850 = vmatprep.subr.bf16.mxu0 0
    %851 = vmatpush2.bf16.msra.mxu0 %v814
    %852 = vmatprep.subr.bf16.mxu0 0
    %853 = vmatpush2.bf16.msra.mxu0 %v813
    %854 = vmatprep.subr.bf16.mxu0 0
    %855 = vmatpush2.bf16.msra.mxu0 %v812
    %856 = vmatprep.subr.bf16.mxu0 0
    %857 = vmatpush2.bf16.msra.mxu0 %v811
    %858 = vmatprep.subr.bf16.mxu0 0
    %859 = vmatpush2.bf16.msra.mxu0 %v810
    %860 = vmatprep.subr.bf16.mxu0 0
    %861 = vmatpush2.bf16.msra.mxu0 %v809
    %862 = vmatprep.subr.bf16.mxu0 0
    %863 = vmatpush2.bf16.msra.mxu0 %v808
    %864 = vmatprep.mubr.bf16.mxu0 %v694
    %865 = vmatmul.mubr.bf16.gmra.mxu0 %v693
    %v866 = vpop.f32.mrf.mxu0
    %v867 = vadd.f32 %v734, %v866
    %v868 = vpop.f32.mrf.mxu0
    %v869 = vpop.f32.mrf.mxu0
    %v870 = vpop.f32.mrf.mxu0
    %871 = vdwg.mxu0
    %s872 = scalar_lea.vmem [#allocation17], 8
    %873 = vst [vmem:[%s872] sm:$0xff] %v867
    %v874 = vld [vmem:[#allocation7] sm:$0xff]
    %v875 = vld [vmem:[#allocation7 + $0x8] sm:$0xff]
    %v876 = vpack.c.bf16 %v874, %v874
    %v877 = vpack.c.bf16 %v875, %v875
    %v878 = vld [vmem:[#allocation13] sm:$0xff]
    %v879 = vld [vmem:[#allocation13 + $0x8] sm:$0xff]
    %v880 = vld [vmem:[#allocation13 + $0x10] sm:$0xff]
    %v881 = vld [vmem:[#allocation13 + $0x18] sm:$0xff]
    %v882 = vld [vmem:[#allocation13 + $0x20] sm:$0xff]
    %v883 = vld [vmem:[#allocation13 + $0x28] sm:$0xff]
    %v884 = vld [vmem:[#allocation13 + $0x30] sm:$0xff]
    %v885 = vld [vmem:[#allocation13 + $0x38] sm:$0xff]
    %v886 = vld [vmem:[#allocation13 + $0x40] sm:$0xff]
    %v887 = vld [vmem:[#allocation13 + $0x48] sm:$0xff]
    %v888 = vld [vmem:[#allocation13 + $0x50] sm:$0xff]
    %v889 = vld [vmem:[#allocation13 + $0x58] sm:$0xff]
    %v890 = vld [vmem:[#allocation13 + $0x60] sm:$0xff]
    %v891 = vld [vmem:[#allocation13 + $0x68] sm:$0xff]
    %v892 = vld [vmem:[#allocation13 + $0x70] sm:$0xff]
    %v893 = vld [vmem:[#allocation13 + $0x78] sm:$0xff]
    %v894 = vld [vmem:[#allocation13 + $0x80] sm:$0xff]
    %v895 = vld [vmem:[#allocation13 + $0x88] sm:$0xff]
    %v896 = vld [vmem:[#allocation13 + $0x90] sm:$0xff]
    %v897 = vld [vmem:[#allocation13 + $0x98] sm:$0xff]
    %v898 = vld [vmem:[#allocation13 + $0xa0] sm:$0xff]
    %v899 = vld [vmem:[#allocation13 + $0xa8] sm:$0xff]
    %v900 = vld [vmem:[#allocation13 + $0xb0] sm:$0xff]
    %v901 = vld [vmem:[#allocation13 + $0xb8] sm:$0xff]
    %v902 = vld [vmem:[#allocation13 + $0xc0] sm:$0xff]
    %v903 = vld [vmem:[#allocation13 + $0xc8] sm:$0xff]
    %v904 = vld [vmem:[#allocation13 + $0xd0] sm:$0xff]
    %v905 = vld [vmem:[#allocation13 + $0xd8] sm:$0xff]
    %v906 = vld [vmem:[#allocation13 + $0xe0] sm:$0xff]
    %v907 = vld [vmem:[#allocation13 + $0xe8] sm:$0xff]
    %v908 = vld [vmem:[#allocation13 + $0xf0] sm:$0xff]
    %v909 = vld [vmem:[#allocation13 + $0xf8] sm:$0xff]
    %s910 = scalar_lea.vmem %s8, 4
    %v911 = vld [vmem:[%s910] sm:$0x3]
    %v913 = vlaneseq
    %v914 = vshrl.u32 %v913, 7
    %v915 = vsub.s32 0, %v914
    %v916 = vrot.slane %v911, %v915
    %v917 = vlaneseq
    %v918 = vshrl.u32 %v917, 7
    %v919 = vsub.s32 1, %v918
    %v920 = vrot.slane %v911, %v919
    %v955 = vunpack.c.l.b16 %v878
    %v956 = vunpack.c.h.b16 %v878
    %v957 = vunpack.c.l.b16 %v879
    %v958 = vunpack.c.h.b16 %v879
    %v959 = vunpack.c.l.b16 %v880
    %v960 = vunpack.c.h.b16 %v880
    %v961 = vunpack.c.l.b16 %v881
    %v962 = vunpack.c.h.b16 %v881
    %v963 = vunpack.c.l.b16 %v882
    %v964 = vunpack.c.h.b16 %v882
    %v965 = vunpack.c.l.b16 %v883
    %v966 = vunpack.c.h.b16 %v883
    %v967 = vunpack.c.l.b16 %v884
    %v968 = vunpack.c.h.b16 %v884
    %v969 = vunpack.c.l.b16 %v885
    %v970 = vunpack.c.h.b16 %v885
    %v971 = vunpack.c.l.b16 %v886
    %v972 = vunpack.c.h.b16 %v886
    %v973 = vunpack.c.l.b16 %v887
    %v974 = vunpack.c.h.b16 %v887
    %v975 = vunpack.c.l.b16 %v888
    %v976 = vunpack.c.h.b16 %v888
    %v977 = vunpack.c.l.b16 %v889
    %v978 = vunpack.c.h.b16 %v889
    %v979 = vunpack.c.l.b16 %v890
    %v980 = vunpack.c.h.b16 %v890
    %v981 = vunpack.c.l.b16 %v891
    %v982 = vunpack.c.h.b16 %v891
    %v983 = vunpack.c.l.b16 %v892
    %v984 = vunpack.c.h.b16 %v892
    %v985 = vunpack.c.l.b16 %v893
    %v986 = vunpack.c.h.b16 %v893
    %v987 = vunpack.c.l.b16 %v894
    %v988 = vunpack.c.h.b16 %v894
    %v989 = vunpack.c.l.b16 %v895
    %v990 = vunpack.c.h.b16 %v895
    %v991 = vunpack.c.l.b16 %v896
    %v992 = vunpack.c.h.b16 %v896
    %v993 = vunpack.c.l.b16 %v897
    %v994 = vunpack.c.h.b16 %v897
    %v995 = vunpack.c.l.b16 %v898
    %v996 = vunpack.c.h.b16 %v898
    %v997 = vunpack.c.l.b16 %v899
    %v998 = vunpack.c.h.b16 %v899
    %v999 = vunpack.c.l.b16 %v900
    %v1000 = vunpack.c.h.b16 %v900
    %v1001 = vunpack.c.l.b16 %v901
    %v1002 = vunpack.c.h.b16 %v901
    %v1003 = vunpack.c.l.b16 %v902
    %v1004 = vunpack.c.h.b16 %v902
    %v1005 = vunpack.c.l.b16 %v903
    %v1006 = vunpack.c.h.b16 %v903
    %v1007 = vunpack.c.l.b16 %v904
    %v1008 = vunpack.c.h.b16 %v904
    %v1009 = vunpack.c.l.b16 %v905
    %v1010 = vunpack.c.h.b16 %v905
    %v1011 = vunpack.c.l.b16 %v906
    %v1012 = vunpack.c.h.b16 %v906
    %v1013 = vunpack.c.l.b16 %v907
    %v1014 = vunpack.c.h.b16 %v907
    %v1015 = vunpack.c.l.b16 %v908
    %v1016 = vunpack.c.h.b16 %v908
    %v1017 = vunpack.c.l.b16 %v909
    %v1018 = vunpack.c.h.b16 %v909
    %v1019 = vpack.c.b16 %v957, %v955
    %v1020 = vpack.c.b16 %v958, %v956
    %v1021 = vpack.c.b16 %v961, %v959
    %v1022 = vpack.c.b16 %v962, %v960
    %v1023 = vpack.c.b16 %v965, %v963
    %v1024 = vpack.c.b16 %v966, %v964
    %v1025 = vpack.c.b16 %v969, %v967
    %v1026 = vpack.c.b16 %v970, %v968
    %v1027 = vpack.c.b16 %v973, %v971
    %v1028 = vpack.c.b16 %v974, %v972
    %v1029 = vpack.c.b16 %v977, %v975
    %v1030 = vpack.c.b16 %v978, %v976
    %v1031 = vpack.c.b16 %v981, %v979
    %v1032 = vpack.c.b16 %v982, %v980
    %v1033 = vpack.c.b16 %v985, %v983
    %v1034 = vpack.c.b16 %v986, %v984
    %v1035 = vpack.c.b16 %v989, %v987
    %v1036 = vpack.c.b16 %v990, %v988
    %v1037 = vpack.c.b16 %v993, %v991
    %v1038 = vpack.c.b16 %v994, %v992
    %v1039 = vpack.c.b16 %v997, %v995
    %v1040 = vpack.c.b16 %v998, %v996
    %v1041 = vpack.c.b16 %v1001, %v999
    %v1042 = vpack.c.b16 %v1002, %v1000
    %v1043 = vpack.c.b16 %v1005, %v1003
    %v1044 = vpack.c.b16 %v1006, %v1004
    %v1045 = vpack.c.b16 %v1009, %v1007
    %v1046 = vpack.c.b16 %v1010, %v1008
    %v1047 = vpack.c.b16 %v1013, %v1011
    %v1048 = vpack.c.b16 %v1014, %v1012
    %v1049 = vpack.c.b16 %v1017, %v1015
    %v1050 = vpack.c.b16 %v1018, %v1016
    %1083 = vmatprep.subr.bf16.mxu0 %v1034
    %1084 = vmatpush1.bf16.msra.mxu0 %v1033
    %1085 = vmatprep.subr.bf16.mxu0 %v1032
    %1086 = vmatpush1.bf16.msra.mxu0 %v1031
    %1087 = vmatprep.subr.bf16.mxu0 %v1030
    %1088 = vmatpush1.bf16.msra.mxu0 %v1029
    %1089 = vmatprep.subr.bf16.mxu0 %v1028
    %1090 = vmatpush1.bf16.msra.mxu0 %v1027
    %1091 = vmatprep.subr.bf16.mxu0 %v1026
    %1092 = vmatpush1.bf16.msra.mxu0 %v1025
    %1093 = vmatprep.subr.bf16.mxu0 %v1024
    %1094 = vmatpush1.bf16.msra.mxu0 %v1023
    %1095 = vmatprep.subr.bf16.mxu0 %v1022
    %1096 = vmatpush1.bf16.msra.mxu0 %v1021
    %1097 = vmatprep.subr.bf16.mxu0 %v1020
    %1098 = vmatpush1.bf16.msra.mxu0 %v1019
    %1099 = vmatprep.subr.bf16.mxu0 %v1050
    %1100 = vmatpush2.bf16.msra.mxu0 %v1049
    %1101 = vmatprep.subr.bf16.mxu0 %v1048
    %1102 = vmatpush2.bf16.msra.mxu0 %v1047
    %1103 = vmatprep.subr.bf16.mxu0 %v1046
    %1104 = vmatpush2.bf16.msra.mxu0 %v1045
    %1105 = vmatprep.subr.bf16.mxu0 %v1044
    %1106 = vmatpush2.bf16.msra.mxu0 %v1043
    %1107 = vmatprep.subr.bf16.mxu0 %v1042
    %1108 = vmatpush2.bf16.msra.mxu0 %v1041
    %1109 = vmatprep.subr.bf16.mxu0 %v1040
    %1110 = vmatpush2.bf16.msra.mxu0 %v1039
    %1111 = vmatprep.subr.bf16.mxu0 %v1038
    %1112 = vmatpush2.bf16.msra.mxu0 %v1037
    %1113 = vmatprep.subr.bf16.mxu0 %v1036
    %1114 = vmatpush2.bf16.msra.mxu0 %v1035
    %1115 = vmatprep.mubr.bf16.mxu0 %v877
    %1116 = vmatmul.mubr.bf16.gmra.mxu0 %v876
    %v1117 = vpop.f32.mrf.mxu0
    %v1118 = vadd.f32 %v916, %v1117
    %v1119 = vpop.f32.mrf.mxu0
    %v1120 = vadd.f32 %v920, %v1119
    %v1121 = vpop.f32.mrf.mxu0
    %v1122 = vpop.f32.mrf.mxu0
    %1123 = vdwg.mxu0
    %v1124 = vmax.f32 %v1118, 0.0
    %v1125 = vmax.f32 %v1120, 0.0
    %v1126 = vpack.c.bf16 %v1124, %v1124
    %v1127 = vpack.c.bf16 %v1125, %v1125
    %s1128 = scalar_lea.vmem [#allocation16], 256
    %v1129 = vld [vmem:[%s1128] sm:$0xf]
    %v1130 = vld [vmem:[%s1128 + $0x4] sm:$0xf]
    %v1131 = vld [vmem:[%s1128 + $0x8] sm:$0xf]
    %v1132 = vld [vmem:[%s1128 + $0xc] sm:$0xf]
    %v1133 = vld [vmem:[%s1128 + $0x10] sm:$0xf]
    %v1134 = vld [vmem:[%s1128 + $0x14] sm:$0xf]
    %v1135 = vld [vmem:[%s1128 + $0x18] sm:$0xf]
    %v1136 = vld [vmem:[%s1128 + $0x1c] sm:$0xf]
    %v1137 = vld [vmem:[%s1128 + $0x20] sm:$0xf]
    %v1138 = vld [vmem:[%s1128 + $0x24] sm:$0xf]
    %v1139 = vld [vmem:[%s1128 + $0x28] sm:$0xf]
    %v1140 = vld [vmem:[%s1128 + $0x2c] sm:$0xf]
    %v1141 = vld [vmem:[%s1128 + $0x30] sm:$0xf]
    %v1142 = vld [vmem:[%s1128 + $0x34] sm:$0xf]
    %v1143 = vld [vmem:[%s1128 + $0x38] sm:$0xf]
    %v1144 = vld [vmem:[%s1128 + $0x3c] sm:$0xf]
    %v1145 = vld [vmem:[%s1128 + $0x40] sm:$0xf]
    %v1146 = vld [vmem:[%s1128 + $0x44] sm:$0xf]
    %v1147 = vld [vmem:[%s1128 + $0x48] sm:$0xf]
    %v1148 = vld [vmem:[%s1128 + $0x4c] sm:$0xf]
    %v1149 = vld [vmem:[%s1128 + $0x50] sm:$0xf]
    %v1150 = vld [vmem:[%s1128 + $0x54] sm:$0xf]
    %v1151 = vld [vmem:[%s1128 + $0x58] sm:$0xf]
    %v1152 = vld [vmem:[%s1128 + $0x5c] sm:$0xf]
    %v1153 = vld [vmem:[%s1128 + $0x60] sm:$0xf]
    %v1154 = vld [vmem:[%s1128 + $0x64] sm:$0xf]
    %v1155 = vld [vmem:[%s1128 + $0x68] sm:$0xf]
    %v1156 = vld [vmem:[%s1128 + $0x6c] sm:$0xf]
    %v1157 = vld [vmem:[%s1128 + $0x70] sm:$0xf]
    %v1158 = vld [vmem:[%s1128 + $0x74] sm:$0xf]
    %v1159 = vld [vmem:[%s1128 + $0x78] sm:$0xf]
    %v1160 = vld [vmem:[%s1128 + $0x7c] sm:$0xf]
    %s1161 = scalar_lea.vmem %s10, 2
    %v1162 = vld [vmem:[%s1161] sm:$0x1]
    %v1164 = vlaneseq
    %v1165 = vshrl.u32 %v1164, 7
    %v1166 = vsub.s32 0, %v1165
    %v1167 = vrot.slane %v1162, %v1166
    %v1201 = vunpack.c.l.b16 %v1129
    %v1202 = vunpack.c.l.b16 %v1130
    %v1203 = vunpack.c.l.b16 %v1131
    %v1204 = vunpack.c.l.b16 %v1132
    %v1205 = vunpack.c.l.b16 %v1133
    %v1206 = vunpack.c.l.b16 %v1134
    %v1207 = vunpack.c.l.b16 %v1135
    %v1208 = vunpack.c.l.b16 %v1136
    %v1209 = vunpack.c.l.b16 %v1137
    %v1210 = vunpack.c.l.b16 %v1138
    %v1211 = vunpack.c.l.b16 %v1139
    %v1212 = vunpack.c.l.b16 %v1140
    %v1213 = vunpack.c.l.b16 %v1141
    %v1214 = vunpack.c.l.b16 %v1142
    %v1215 = vunpack.c.l.b16 %v1143
    %v1216 = vunpack.c.l.b16 %v1144
    %v1217 = vunpack.c.l.b16 %v1145
    %v1218 = vunpack.c.l.b16 %v1146
    %v1219 = vunpack.c.l.b16 %v1147
    %v1220 = vunpack.c.l.b16 %v1148
    %v1221 = vunpack.c.l.b16 %v1149
    %v1222 = vunpack.c.l.b16 %v1150
    %v1223 = vunpack.c.l.b16 %v1151
    %v1224 = vunpack.c.l.b16 %v1152
    %v1225 = vunpack.c.l.b16 %v1153
    %v1226 = vunpack.c.l.b16 %v1154
    %v1227 = vunpack.c.l.b16 %v1155
    %v1228 = vunpack.c.l.b16 %v1156
    %v1229 = vunpack.c.l.b16 %v1157
    %v1230 = vunpack.c.l.b16 %v1158
    %v1231 = vunpack.c.l.b16 %v1159
    %v1232 = vunpack.c.l.b16 %v1160
    %v1233 = vpack.c.b16 %v1202, %v1201
    %v1234 = vpack.c.b16 %v1204, %v1203
    %v1235 = vpack.c.b16 %v1206, %v1205
    %v1236 = vpack.c.b16 %v1208, %v1207
    %v1237 = vpack.c.b16 %v1210, %v1209
    %v1238 = vpack.c.b16 %v1212, %v1211
    %v1239 = vpack.c.b16 %v1214, %v1213
    %v1240 = vpack.c.b16 %v1216, %v1215
    %v1241 = vpack.c.b16 %v1218, %v1217
    %v1242 = vpack.c.b16 %v1220, %v1219
    %v1243 = vpack.c.b16 %v1222, %v1221
    %v1244 = vpack.c.b16 %v1224, %v1223
    %v1245 = vpack.c.b16 %v1226, %v1225
    %v1246 = vpack.c.b16 %v1228, %v1227
    %v1247 = vpack.c.b16 %v1230, %v1229
    %v1248 = vpack.c.b16 %v1232, %v1231
    %1265 = vmatprep.subr.bf16.mxu0 0
    %1266 = vmatpush1.bf16.msra.mxu0 %v1240
    %1267 = vmatprep.subr.bf16.mxu0 0
    %1268 = vmatpush1.bf16.msra.mxu0 %v1239
    %1269 = vmatprep.subr.bf16.mxu0 0
    %1270 = vmatpush1.bf16.msra.mxu0 %v1238
    %1271 = vmatprep.subr.bf16.mxu0 0
    %1272 = vmatpush1.bf16.msra.mxu0 %v1237
    %1273 = vmatprep.subr.bf16.mxu0 0
    %1274 = vmatpush1.bf16.msra.mxu0 %v1236
    %1275 = vmatprep.subr.bf16.mxu0 0
    %1276 = vmatpush1.bf16.msra.mxu0 %v1235
    %1277 = vmatprep.subr.bf16.mxu0 0
    %1278 = vmatpush1.bf16.msra.mxu0 %v1234
    %1279 = vmatprep.subr.bf16.mxu0 0
    %1280 = vmatpush1.bf16.msra.mxu0 %v1233
    %1281 = vmatprep.subr.bf16.mxu0 0
    %1282 = vmatpush2.bf16.msra.mxu0 %v1248
    %1283 = vmatprep.subr.bf16.mxu0 0
    %1284 = vmatpush2.bf16.msra.mxu0 %v1247
    %1285 = vmatprep.subr.bf16.mxu0 0
    %1286 = vmatpush2.bf16.msra.mxu0 %v1246
    %1287 = vmatprep.subr.bf16.mxu0 0
    %1288 = vmatpush2.bf16.msra.mxu0 %v1245
    %1289 = vmatprep.subr.bf16.mxu0 0
    %1290 = vmatpush2.bf16.msra.mxu0 %v1244
    %1291 = vmatprep.subr.bf16.mxu0 0
    %1292 = vmatpush2.bf16.msra.mxu0 %v1243
    %1293 = vmatprep.subr.bf16.mxu0 0
    %1294 = vmatpush2.bf16.msra.mxu0 %v1242
    %1295 = vmatprep.subr.bf16.mxu0 0
    %1296 = vmatpush2.bf16.msra.mxu0 %v1241
    %1297 = vmatprep.mubr.bf16.mxu0 %v1127
    %1298 = vmatmul.mubr.bf16.gmra.mxu0 %v1126
    %v1299 = vpop.f32.mrf.mxu0
    %v1300 = vadd.f32 %v1167, %v1299
    %v1301 = vpop.f32.mrf.mxu0
    %v1302 = vpop.f32.mrf.mxu0
    %v1303 = vpop.f32.mrf.mxu0
    %1304 = vdwg.mxu0
    %s1305 = scalar_lea.vmem [#allocation17], 16
    %1306 = vst [vmem:[%s1305] sm:$0xff] %v1300
    %v1307 = vld [vmem:[#allocation8] sm:$0xff]
    %v1308 = vld [vmem:[#allocation8 + $0x8] sm:$0xff]
    %v1309 = vpack.c.bf16 %v1307, %v1307
    %v1310 = vpack.c.bf16 %v1308, %v1308
    %v1311 = vld [vmem:[#allocation14] sm:$0xff]
    %v1312 = vld [vmem:[#allocation14 + $0x8] sm:$0xff]
    %v1313 = vld [vmem:[#allocation14 + $0x10] sm:$0xff]
    %v1314 = vld [vmem:[#allocation14 + $0x18] sm:$0xff]
    %v1315 = vld [vmem:[#allocation14 + $0x20] sm:$0xff]
    %v1316 = vld [vmem:[#allocation14 + $0x28] sm:$0xff]
    %v1317 = vld [vmem:[#allocation14 + $0x30] sm:$0xff]
    %v1318 = vld [vmem:[#allocation14 + $0x38] sm:$0xff]
    %v1319 = vld [vmem:[#allocation14 + $0x40] sm:$0xff]
    %v1320 = vld [vmem:[#allocation14 + $0x48] sm:$0xff]
    %v1321 = vld [vmem:[#allocation14 + $0x50] sm:$0xff]
    %v1322 = vld [vmem:[#allocation14 + $0x58] sm:$0xff]
    %v1323 = vld [vmem:[#allocation14 + $0x60] sm:$0xff]
    %v1324 = vld [vmem:[#allocation14 + $0x68] sm:$0xff]
    %v1325 = vld [vmem:[#allocation14 + $0x70] sm:$0xff]
    %v1326 = vld [vmem:[#allocation14 + $0x78] sm:$0xff]
    %v1327 = vld [vmem:[#allocation14 + $0x80] sm:$0xff]
    %v1328 = vld [vmem:[#allocation14 + $0x88] sm:$0xff]
    %v1329 = vld [vmem:[#allocation14 + $0x90] sm:$0xff]
    %v1330 = vld [vmem:[#allocation14 + $0x98] sm:$0xff]
    %v1331 = vld [vmem:[#allocation14 + $0xa0] sm:$0xff]
    %v1332 = vld [vmem:[#allocation14 + $0xa8] sm:$0xff]
    %v1333 = vld [vmem:[#allocation14 + $0xb0] sm:$0xff]
    %v1334 = vld [vmem:[#allocation14 + $0xb8] sm:$0xff]
    %v1335 = vld [vmem:[#allocation14 + $0xc0] sm:$0xff]
    %v1336 = vld [vmem:[#allocation14 + $0xc8] sm:$0xff]
    %v1337 = vld [vmem:[#allocation14 + $0xd0] sm:$0xff]
    %v1338 = vld [vmem:[#allocation14 + $0xd8] sm:$0xff]
    %v1339 = vld [vmem:[#allocation14 + $0xe0] sm:$0xff]
    %v1340 = vld [vmem:[#allocation14 + $0xe8] sm:$0xff]
    %v1341 = vld [vmem:[#allocation14 + $0xf0] sm:$0xff]
    %v1342 = vld [vmem:[#allocation14 + $0xf8] sm:$0xff]
    %s1343 = scalar_lea.vmem %s8, 6
    %v1344 = vld [vmem:[%s1343] sm:$0x3]
    %v1346 = vlaneseq
    %v1347 = vshrl.u32 %v1346, 7
    %v1348 = vsub.s32 0, %v1347
    %v1349 = vrot.slane %v1344, %v1348
    %v1350 = vlaneseq
    %v1351 = vshrl.u32 %v1350, 7
    %v1352 = vsub.s32 1, %v1351
    %v1353 = vrot.slane %v1344, %v1352
    %v1388 = vunpack.c.l.b16 %v1311
    %v1389 = vunpack.c.h.b16 %v1311
    %v1390 = vunpack.c.l.b16 %v1312
    %v1391 = vunpack.c.h.b16 %v1312
    %v1392 = vunpack.c.l.b16 %v1313
    %v1393 = vunpack.c.h.b16 %v1313
    %v1394 = vunpack.c.l.b16 %v1314
    %v1395 = vunpack.c.h.b16 %v1314
    %v1396 = vunpack.c.l.b16 %v1315
    %v1397 = vunpack.c.h.b16 %v1315
    %v1398 = vunpack.c.l.b16 %v1316
    %v1399 = vunpack.c.h.b16 %v1316
    %v1400 = vunpack.c.l.b16 %v1317
    %v1401 = vunpack.c.h.b16 %v1317
    %v1402 = vunpack.c.l.b16 %v1318
    %v1403 = vunpack.c.h.b16 %v1318
    %v1404 = vunpack.c.l.b16 %v1319
    %v1405 = vunpack.c.h.b16 %v1319
    %v1406 = vunpack.c.l.b16 %v1320
    %v1407 = vunpack.c.h.b16 %v1320
    %v1408 = vunpack.c.l.b16 %v1321
    %v1409 = vunpack.c.h.b16 %v1321
    %v1410 = vunpack.c.l.b16 %v1322
    %v1411 = vunpack.c.h.b16 %v1322
    %v1412 = vunpack.c.l.b16 %v1323
    %v1413 = vunpack.c.h.b16 %v1323
    %v1414 = vunpack.c.l.b16 %v1324
    %v1415 = vunpack.c.h.b16 %v1324
    %v1416 = vunpack.c.l.b16 %v1325
    %v1417 = vunpack.c.h.b16 %v1325
    %v1418 = vunpack.c.l.b16 %v1326
    %v1419 = vunpack.c.h.b16 %v1326
    %v1420 = vunpack.c.l.b16 %v1327
    %v1421 = vunpack.c.h.b16 %v1327
    %v1422 = vunpack.c.l.b16 %v1328
    %v1423 = vunpack.c.h.b16 %v1328
    %v1424 = vunpack.c.l.b16 %v1329
    %v1425 = vunpack.c.h.b16 %v1329
    %v1426 = vunpack.c.l.b16 %v1330
    %v1427 = vunpack.c.h.b16 %v1330
    %v1428 = vunpack.c.l.b16 %v1331
    %v1429 = vunpack.c.h.b16 %v1331
    %v1430 = vunpack.c.l.b16 %v1332
    %v1431 = vunpack.c.h.b16 %v1332
    %v1432 = vunpack.c.l.b16 %v1333
    %v1433 = vunpack.c.h.b16 %v1333
    %v1434 = vunpack.c.l.b16 %v1334
    %v1435 = vunpack.c.h.b16 %v1334
    %v1436 = vunpack.c.l.b16 %v1335
    %v1437 = vunpack.c.h.b16 %v1335
    %v1438 = vunpack.c.l.b16 %v1336
    %v1439 = vunpack.c.h.b16 %v1336
    %v1440 = vunpack.c.l.b16 %v1337
    %v1441 = vunpack.c.h.b16 %v1337
    %v1442 = vunpack.c.l.b16 %v1338
    %v1443 = vunpack.c.h.b16 %v1338
    %v1444 = vunpack.c.l.b16 %v1339
    %v1445 = vunpack.c.h.b16 %v1339
    %v1446 = vunpack.c.l.b16 %v1340
    %v1447 = vunpack.c.h.b16 %v1340
    %v1448 = vunpack.c.l.b16 %v1341
    %v1449 = vunpack.c.h.b16 %v1341
    %v1450 = vunpack.c.l.b16 %v1342
    %v1451 = vunpack.c.h.b16 %v1342
    %v1452 = vpack.c.b16 %v1390, %v1388
    %v1453 = vpack.c.b16 %v1391, %v1389
    %v1454 = vpack.c.b16 %v1394, %v1392
    %v1455 = vpack.c.b16 %v1395, %v1393
    %v1456 = vpack.c.b16 %v1398, %v1396
    %v1457 = vpack.c.b16 %v1399, %v1397
    %v1458 = vpack.c.b16 %v1402, %v1400
    %v1459 = vpack.c.b16 %v1403, %v1401
    %v1460 = vpack.c.b16 %v1406, %v1404
    %v1461 = vpack.c.b16 %v1407, %v1405
    %v1462 = vpack.c.b16 %v1410, %v1408
    %v1463 = vpack.c.b16 %v1411, %v1409
    %v1464 = vpack.c.b16 %v1414, %v1412
    %v1465 = vpack.c.b16 %v1415, %v1413
    %v1466 = vpack.c.b16 %v1418, %v1416
    %v1467 = vpack.c.b16 %v1419, %v1417
    %v1468 = vpack.c.b16 %v1422, %v1420
    %v1469 = vpack.c.b16 %v1423, %v1421
    %v1470 = vpack.c.b16 %v1426, %v1424
    %v1471 = vpack.c.b16 %v1427, %v1425
    %v1472 = vpack.c.b16 %v1430, %v1428
    %v1473 = vpack.c.b16 %v1431, %v1429
    %v1474 = vpack.c.b16 %v1434, %v1432
    %v1475 = vpack.c.b16 %v1435, %v1433
    %v1476 = vpack.c.b16 %v1438, %v1436
    %v1477 = vpack.c.b16 %v1439, %v1437
    %v1478 = vpack.c.b16 %v1442, %v1440
    %v1479 = vpack.c.b16 %v1443, %v1441
    %v1480 = vpack.c.b16 %v1446, %v1444
    %v1481 = vpack.c.b16 %v1447, %v1445
    %v1482 = vpack.c.b16 %v1450, %v1448
    %v1483 = vpack.c.b16 %v1451, %v1449
    %1516 = vmatprep.subr.bf16.mxu0 %v1467
    %1517 = vmatpush1.bf16.msra.mxu0 %v1466
    %1518 = vmatprep.subr.bf16.mxu0 %v1465
    %1519 = vmatpush1.bf16.msra.mxu0 %v1464
    %1520 = vmatprep.subr.bf16.mxu0 %v1463
    %1521 = vmatpush1.bf16.msra.mxu0 %v1462
    %1522 = vmatprep.subr.bf16.mxu0 %v1461
    %1523 = vmatpush1.bf16.msra.mxu0 %v1460
    %1524 = vmatprep.subr.bf16.mxu0 %v1459
    %1525 = vmatpush1.bf16.msra.mxu0 %v1458
    %1526 = vmatprep.subr.bf16.mxu0 %v1457
    %1527 = vmatpush1.bf16.msra.mxu0 %v1456
    %1528 = vmatprep.subr.bf16.mxu0 %v1455
    %1529 = vmatpush1.bf16.msra.mxu0 %v1454
    %1530 = vmatprep.subr.bf16.mxu0 %v1453
    %1531 = vmatpush1.bf16.msra.mxu0 %v1452
    %1532 = vmatprep.subr.bf16.mxu0 %v1483
    %1533 = vmatpush2.bf16.msra.mxu0 %v1482
    %1534 = vmatprep.subr.bf16.mxu0 %v1481
    %1535 = vmatpush2.bf16.msra.mxu0 %v1480
    %1536 = vmatprep.subr.bf16.mxu0 %v1479
    %1537 = vmatpush2.bf16.msra.mxu0 %v1478
    %1538 = vmatprep.subr.bf16.mxu0 %v1477
    %1539 = vmatpush2.bf16.msra.mxu0 %v1476
    %1540 = vmatprep.subr.bf16.mxu0 %v1475
    %1541 = vmatpush2.bf16.msra.mxu0 %v1474
    %1542 = vmatprep.subr.bf16.mxu0 %v1473
    %1543 = vmatpush2.bf16.msra.mxu0 %v1472
    %1544 = vmatprep.subr.bf16.mxu0 %v1471
    %1545 = vmatpush2.bf16.msra.mxu0 %v1470
    %1546 = vmatprep.subr.bf16.mxu0 %v1469
    %1547 = vmatpush2.bf16.msra.mxu0 %v1468
    %1548 = vmatprep.mubr.bf16.mxu0 %v1310
    %1549 = vmatmul.mubr.bf16.gmra.mxu0 %v1309
    %v1550 = vpop.f32.mrf.mxu0
    %v1551 = vadd.f32 %v1349, %v1550
    %v1552 = vpop.f32.mrf.mxu0
    %v1553 = vadd.f32 %v1353, %v1552
    %v1554 = vpop.f32.mrf.mxu0
    %v1555 = vpop.f32.mrf.mxu0
    %1556 = vdwg.mxu0
    %v1557 = vmax.f32 %v1551, 0.0
    %v1558 = vmax.f32 %v1553, 0.0
    %v1559 = vpack.c.bf16 %v1557, %v1557
    %v1560 = vpack.c.bf16 %v1558, %v1558
    %s1561 = scalar_lea.vmem [#allocation16], 384
    %v1562 = vld [vmem:[%s1561] sm:$0xf]
    %v1563 = vld [vmem:[%s1561 + $0x4] sm:$0xf]
    %v1564 = vld [vmem:[%s1561 + $0x8] sm:$0xf]
    %v1565 = vld [vmem:[%s1561 + $0xc] sm:$0xf]
    %v1566 = vld [vmem:[%s1561 + $0x10] sm:$0xf]
    %v1567 = vld [vmem:[%s1561 + $0x14] sm:$0xf]
    %v1568 = vld [vmem:[%s1561 + $0x18] sm:$0xf]
    %v1569 = vld [vmem:[%s1561 + $0x1c] sm:$0xf]
    %v1570 = vld [vmem:[%s1561 + $0x20] sm:$0xf]
    %v1571 = vld [vmem:[%s1561 + $0x24] sm:$0xf]
    %v1572 = vld [vmem:[%s1561 + $0x28] sm:$0xf]
    %v1573 = vld [vmem:[%s1561 + $0x2c] sm:$0xf]
    %v1574 = vld [vmem:[%s1561 + $0x30] sm:$0xf]
    %v1575 = vld [vmem:[%s1561 + $0x34] sm:$0xf]
    %v1576 = vld [vmem:[%s1561 + $0x38] sm:$0xf]
    %v1577 = vld [vmem:[%s1561 + $0x3c] sm:$0xf]
    %v1578 = vld [vmem:[%s1561 + $0x40] sm:$0xf]
    %v1579 = vld [vmem:[%s1561 + $0x44] sm:$0xf]
    %v1580 = vld [vmem:[%s1561 + $0x48] sm:$0xf]
    %v1581 = vld [vmem:[%s1561 + $0x4c] sm:$0xf]
    %v1582 = vld [vmem:[%s1561 + $0x50] sm:$0xf]
    %v1583 = vld [vmem:[%s1561 + $0x54] sm:$0xf]
    %v1584 = vld [vmem:[%s1561 + $0x58] sm:$0xf]
    %v1585 = vld [vmem:[%s1561 + $0x5c] sm:$0xf]
    %v1586 = vld [vmem:[%s1561 + $0x60] sm:$0xf]
    %v1587 = vld [vmem:[%s1561 + $0x64] sm:$0xf]
    %v1588 = vld [vmem:[%s1561 + $0x68] sm:$0xf]
    %v1589 = vld [vmem:[%s1561 + $0x6c] sm:$0xf]
    %v1590 = vld [vmem:[%s1561 + $0x70] sm:$0xf]
    %v1591 = vld [vmem:[%s1561 + $0x74] sm:$0xf]
    %v1592 = vld [vmem:[%s1561 + $0x78] sm:$0xf]
    %v1593 = vld [vmem:[%s1561 + $0x7c] sm:$0xf]
    %s1594 = scalar_lea.vmem %s10, 3
    %v1595 = vld [vmem:[%s1594] sm:$0x1]
    %v1597 = vlaneseq
    %v1598 = vshrl.u32 %v1597, 7
    %v1599 = vsub.s32 0, %v1598
    %v1600 = vrot.slane %v1595, %v1599
    %v1634 = vunpack.c.l.b16 %v1562
    %v1635 = vunpack.c.l.b16 %v1563
    %v1636 = vunpack.c.l.b16 %v1564
    %v1637 = vunpack.c.l.b16 %v1565
    %v1638 = vunpack.c.l.b16 %v1566
    %v1639 = vunpack.c.l.b16 %v1567
    %v1640 = vunpack.c.l.b16 %v1568
    %v1641 = vunpack.c.l.b16 %v1569
    %v1642 = vunpack.c.l.b16 %v1570
    %v1643 = vunpack.c.l.b16 %v1571
    %v1644 = vunpack.c.l.b16 %v1572
    %v1645 = vunpack.c.l.b16 %v1573
    %v1646 = vunpack.c.l.b16 %v1574
    %v1647 = vunpack.c.l.b16 %v1575
    %v1648 = vunpack.c.l.b16 %v1576
    %v1649 = vunpack.c.l.b16 %v1577
    %v1650 = vunpack.c.l.b16 %v1578
    %v1651 = vunpack.c.l.b16 %v1579
    %v1652 = vunpack.c.l.b16 %v1580
    %v1653 = vunpack.c.l.b16 %v1581
    %v1654 = vunpack.c.l.b16 %v1582
    %v1655 = vunpack.c.l.b16 %v1583
    %v1656 = vunpack.c.l.b16 %v1584
    %v1657 = vunpack.c.l.b16 %v1585
    %v1658 = vunpack.c.l.b16 %v1586
    %v1659 = vunpack.c.l.b16 %v1587
    %v1660 = vunpack.c.l.b16 %v1588
    %v1661 = vunpack.c.l.b16 %v1589
    %v1662 = vunpack.c.l.b16 %v1590
    %v1663 = vunpack.c.l.b16 %v1591
    %v1664 = vunpack.c.l.b16 %v1592
    %v1665 = vunpack.c.l.b16 %v1593
    %v1666 = vpack.c.b16 %v1635, %v1634
    %v1667 = vpack.c.b16 %v1637, %v1636
    %v1668 = vpack.c.b16 %v1639, %v1638
    %v1669 = vpack.c.b16 %v1641, %v1640
    %v1670 = vpack.c.b16 %v1643, %v1642
    %v1671 = vpack.c.b16 %v1645, %v1644
    %v1672 = vpack.c.b16 %v1647, %v1646
    %v1673 = vpack.c.b16 %v1649, %v1648
    %v1674 = vpack.c.b16 %v1651, %v1650
    %v1675 = vpack.c.b16 %v1653, %v1652
    %v1676 = vpack.c.b16 %v1655, %v1654
    %v1677 = vpack.c.b16 %v1657, %v1656
    %v1678 = vpack.c.b16 %v1659, %v1658
    %v1679 = vpack.c.b16 %v1661, %v1660
    %v1680 = vpack.c.b16 %v1663, %v1662
    %v1681 = vpack.c.b16 %v1665, %v1664
    %1698 = vmatprep.subr.bf16.mxu0 0
    %1699 = vmatpush1.bf16.msra.mxu0 %v1673
    %1700 = vmatprep.subr.bf16.mxu0 0
    %1701 = vmatpush1.bf16.msra.mxu0 %v1672
    %1702 = vmatprep.subr.bf16.mxu0 0
    %1703 = vmatpush1.bf16.msra.mxu0 %v1671
    %1704 = vmatprep.subr.bf16.mxu0 0
    %1705 = vmatpush1.bf16.msra.mxu0 %v1670
    %1706 = vmatprep.subr.bf16.mxu0 0
    %1707 = vmatpush1.bf16.msra.mxu0 %v1669
    %1708 = vmatprep.subr.bf16.mxu0 0
    %1709 = vmatpush1.bf16.msra.mxu0 %v1668
    %1710 = vmatprep.subr.bf16.mxu0 0
    %1711 = vmatpush1.bf16.msra.mxu0 %v1667
    %1712 = vmatprep.subr.bf16.mxu0 0
    %1713 = vmatpush1.bf16.msra.mxu0 %v1666
    %1714 = vmatprep.subr.bf16.mxu0 0
    %1715 = vmatpush2.bf16.msra.mxu0 %v1681
    %1716 = vmatprep.subr.bf16.mxu0 0
    %1717 = vmatpush2.bf16.msra.mxu0 %v1680
    %1718 = vmatprep.subr.bf16.mxu0 0
    %1719 = vmatpush2.bf16.msra.mxu0 %v1679
    %1720 = vmatprep.subr.bf16.mxu0 0
    %1721 = vmatpush2.bf16.msra.mxu0 %v1678
    %1722 = vmatprep.subr.bf16.mxu0 0
    %1723 = vmatpush2.bf16.msra.mxu0 %v1677
    %1724 = vmatprep.subr.bf16.mxu0 0
    %1725 = vmatpush2.bf16.msra.mxu0 %v1676
    %1726 = vmatprep.subr.bf16.mxu0 0
    %1727 = vmatpush2.bf16.msra.mxu0 %v1675
    %1728 = vmatprep.subr.bf16.mxu0 0
    %1729 = vmatpush2.bf16.msra.mxu0 %v1674
    %1730 = vmatprep.mubr.bf16.mxu0 %v1560
    %1731 = vmatmul.mubr.bf16.gmra.mxu0 %v1559
    %v1732 = vpop.f32.mrf.mxu0
    %v1733 = vadd.f32 %v1600, %v1732
    %v1734 = vpop.f32.mrf.mxu0
    %v1735 = vpop.f32.mrf.mxu0
    %v1736 = vpop.f32.mrf.mxu0
    %1737 = vdwg.mxu0
    %s1738 = scalar_lea.vmem [#allocation17], 24
    %1739 = vst [vmem:[%s1738] sm:$0xff] %v1733
    // Predicated region
    $region82: #{tpu_custom_call.1} parent=1 // pred_check
      _
    $region83: #{tpu_custom_call.1} parent=1 // pred_check_branch
      %1741 = sbr.rel (0) target = $region85
    $region84: #{tpu_custom_call.1} parent=1 // pred_region
      %s1743 = ssub.s32 512, 512
      %1744 = vsyncadd [#allocation4], %s1743
      %s1745 = sshll.u32 [#allocation17], 4
      %s1746 = int_to_ptr.vmem [resolvable:$true] %s1745
      %1751 = dma.vmem_to_hbm [thread:$0]  %s1746, 512, %s11, [#allocation4], 128, 128, 8
    $region85: #{tpu_custom_call.1} parent=1 // pred_fallthru
      _
    // Predicated region
    $region86: #{tpu_custom_call.1} parent=1 // pred_check
      _
    $region87: #{tpu_custom_call.1} parent=1 // pred_check_branch
      %1753 = sbr.rel (0) target = $region89
    $region88: #{tpu_custom_call.1} parent=1 // pred_region
      %1754 = dma.done [#allocation4], 512
    $region89: #{tpu_custom_call.1} parent=1 // pred_fallthru
      _
    %1755 = vsyncpa [#allocation3], 1
    %1756 = vsyncpa [#allocation6], 1
    %1757 = vsyncpa [#allocation9], 1
    %1758 = vsyncpa [#allocation12], 1
    %1759 = vsyncpa [#allocation15], 1
    %1760 = vsyncpa [#allocation4], 1

</llo_original>
